<compile_context>
chip_gen: v6e
topology: v6e:2x2x1
jax: 0.10.0
libtpu: 0.0.40
codegen_flags: <defaults>
</compile_context>

<pallas_src>
import numpy as np
import jax
import jax.numpy as jnp
from jax.experimental import pallas as pl
from jax.experimental.pallas import tpu as pltpu


# -------------------- model hyper-parameters (small, synthetic) --------------
VOCAB = 10        # message alphabet size (token 0 == EOS)
T = 8             # max message length
E = 16            # embedding dim
H = 32            # GRU hidden dim
N_ATTR = 4        # opts.n_attributes
N_VAL = 8         # opts.n_values
OUT = N_ATTR * N_VAL            # 32
B = 16            # demo batch size (wrapper handles any B via padding)

# -------------------- kernel layout constants --------------------------------
IN_W = 128                      # lane width of the input slab / every matmul RHS
MAX_TB = 256                    # cap on batch rows per grid block
MXU_DTYPE = jnp.float32         # keep f32 so the numeric check stays tight (see TODO)

# packed weight-slab row offsets
ROW_TABLE = 0                   # rows [0,128): emb @ W_ih (+folded biases); rows >= VOCAB are 0
ROW_WHH = 128                   # rows [128,160): fused W_hh [r|z|n]; cols >= 3H are 0
ROW_WOUT = 160                  # rows [160,192): W_out; cols >= OUT are 0
ROW_BOUT = 192                  # row 192: b_out; cols >= OUT are 0
ROW_BHN = 193                   # row 193: b_hh of the n gate; cols >= H are 0
W_ROWS = 200                    # padded to a sublane multiple

assert 3 * H <= IN_W and OUT <= IN_W and VOCAB <= IN_W - H


# ------------------------------ Pallas kernel --------------------------------
def gru_receiver_kernel(x_ref, w_ref, out_ref, g_ref):
    """One batch block (tb rows) of the GRU receiver.

    x_ref  : (T*tb, 128)  one-hot tokens in cols [0, VOCAB); EOS-selection
                          mask replicated in cols [128-H, 128); rows are
                          time-major within the block (row = t*tb + b_local).
    w_ref  : (200, 128)   packed parameters (see prepare_kernel_params).
    out_ref: (tb, 128)    logits in cols [0, OUT), zeros elsewhere.
    g_ref  : (T*tb, 128)  VMEM scratch: input-side gate pre-activations.
    """
    tb = out_ref.shape[0]

    # (1) fused embedding lookup + input projection + bias for ALL timesteps:
    # a single lane-dense MXU op (the one-hot rows select table rows; the
    # mask columns hit all-zero table rows and contribute nothing).
    g_ref[...] = jnp.dot(x_ref[...], w_ref[ROW_TABLE:ROW_TABLE + IN_W, :],
                         preferred_element_type=jnp.float32)

    # loop-invariant operands, hoisted (including the b_hn broadcast).
    w_hh = w_ref[ROW_WHH:ROW_WHH + H, :]                       # (H, 128): [r|z|n|0]
    b_hn = jnp.broadcast_to(
        w_ref[ROW_BHN:ROW_BHN + 1, 0:H].astype(jnp.float32), (tb, H))

    def step(t, carry):
        h, h_sel = carry
        row = pl.multiple_of(t * tb, tb)
        gt = g_ref[pl.ds(row, tb), :]                          # (tb, 128) f32
        a = jnp.dot(h.astype(MXU_DTYPE), w_hh,                 # one fused W_hh matmul
                    preferred_element_type=jnp.float32)        # (tb, 128) f32
        r = jax.nn.sigmoid(gt[:, 0:H] + a[:, 0:H])
        z = jax.nn.sigmoid(gt[:, H:2 * H] + a[:, H:2 * H])
        n = jnp.tanh(gt[:, 2 * H:3 * H] + r * (a[:, 2 * H:3 * H] + b_hn))
        h = (1.0 - z) * n + z * h
        # EOS selection: mask (one-hot over t) lives in the last H lanes of x.
        m = x_ref[pl.ds(row, tb), IN_W - H:IN_W].astype(jnp.float32)
        return h, h_sel + m * h

    h0 = jnp.zeros((tb, H), jnp.float32)
    _, h_sel = jax.lax.fori_loop(0, T, step, (h0, h0), unroll=True)

    # (2) receiver head: W_out/b_out are zero-padded to 128 cols so the store
    # is a full unmasked (tb, 128) write.
    out_ref[...] = (jnp.dot(h_sel.astype(MXU_DTYPE),
                            w_ref[ROW_WOUT:ROW_WOUT + H, :],
                            preferred_element_type=jnp.float32)
                    + w_ref[ROW_BOUT:ROW_BOUT + 1, :].astype(jnp.float32))


# ------------------------------ JAX glue -------------------------------------
def _round_up(x, m):
    return ((x + m - 1) // m) * m


def find_lengths(message):
    """EGG find_lengths: index of first EOS (0) + 1, clamped to T."""
    max_k = message.shape[1]
    zero_mask = (message == 0)
    lengths = max_k - jnp.sum(jnp.cumsum(zero_mask, axis=1) > 0, axis=1)
    return jnp.minimum(lengths + 1, max_k).astype(jnp.int32)


def prepare_kernel_params(params):
    """One-time host-side re-layout into a single packed (200, 128) slab.

    table[v] = emb[v] @ [W_ir|W_iz|W_in] + (b_ih + [b_hh_r | b_hh_z | 0])
    so one matmul of the one-hot slab against the table yields all input-side
    gate pre-activations with biases already folded in.
    """
    hp = jax.lax.Precision.HIGHEST
    b_fold = params["b_ih"] + jnp.concatenate(
        [params["b_hh"][:, :2 * H], jnp.zeros((1, H), jnp.float32)], axis=1)
    table = jnp.dot(params["embedding"], params["w_ih"], precision=hp) + b_fold

    slab = jnp.zeros((W_ROWS, IN_W), jnp.float32)
    slab = slab.at[0:VOCAB, 0:3 * H].set(table)                       # folded embedding+W_ih
    slab = slab.at[ROW_WHH:ROW_WHH + H, 0:3 * H].set(params["w_hh"])  # fused W_hh [r|z|n]
    slab = slab.at[ROW_WOUT:ROW_WOUT + H, 0:OUT].set(params["w_out"])
    slab = slab.at[ROW_BOUT, 0:OUT].set(params["b_out"][0])
    slab = slab.at[ROW_BHN, 0:H].set(params["b_hh"][0, 2 * H:])
    return slab.astype(MXU_DTYPE)


def rnn_receiver_bc_forward(message, w_slab):
    """Equivalent of RnnReceiverBC.forward(message).

    Returns (receiver_output, log_prob_r, entropy_r, batch_size) with
    receiver_output of shape (B, n_attributes, n_values).
    """
    b_actual, t_len = message.shape
    assert t_len == T
    lengths = find_lengths(message)                                    # (B,)
    mask = jax.nn.one_hot(lengths - 1, t_len, dtype=jnp.float32)       # (B, T)

    # batch tiling: biggest block up to MAX_TB; padded rows are all-EOS with a
    # zero mask and get discarded below.
    b8 = _round_up(b_actual, 8)
    tb = min(MAX_TB, b8)
    b_pad = _round_up(b8, tb)
    n_blk = b_pad // tb
    pad = b_pad - b_actual

    msg_p = jnp.pad(message.astype(jnp.int32), ((0, pad), (0, 0)))
    mask_p = jnp.pad(mask, ((0, pad), (0, 0)))

    # lane-dense input slab: one-hot tokens in cols [0,VOCAB), EOS mask
    # replicated across cols [128-H, 128); table rows for those columns are 0.
    onehot = jax.nn.one_hot(msg_p, VOCAB, dtype=jnp.float32)           # (b_pad, T, VOCAB)
    x = jnp.zeros((b_pad, T, IN_W), jnp.float32)
    x = x.at[:, :, 0:VOCAB].set(onehot)
    x = x.at[:, :, IN_W - H:].set(mask_p[:, :, None])
    # time-major within each block: row = t*tb + b_local.
    x_blk = x.reshape(n_blk, tb, T, IN_W).transpose(0, 2, 1, 3).reshape(
        n_blk, T * tb, IN_W).astype(MXU_DTYPE)

    out = pl.pallas_call(
        gru_receiver_kernel,
        out_shape=jax.ShapeDtypeStruct((b_pad, IN_W), jnp.float32),
        grid_spec=pltpu.PrefetchScalarGridSpec(
            num_scalar_prefetch=0,
            grid=(n_blk,),
            in_specs=[
                pl.BlockSpec((None, T * tb, IN_W), lambda i: (i, 0, 0)),  # input slab
                pl.BlockSpec((W_ROWS, IN_W), lambda i: (0, 0)),           # packed params
            ],
            out_specs=pl.BlockSpec((tb, IN_W), lambda i: (i, 0)),
            scratch_shapes=[pltpu.VMEM((T * tb, IN_W), jnp.float32)],     # gate pre-acts
        ),
        compiler_params=pltpu.CompilerParams(
            dimension_semantics=("parallel",)),
    )(x_blk, w_slab)

    receiver_output = out[:b_actual, :OUT].reshape(b_actual, N_ATTR, N_VAL)
    # RnnReceiverDeterministic returns zero log-probs and entropies.
    log_prob_r = jnp.zeros((b_actual,), dtype=jnp.float32)
    entropy_r = jnp.zeros((b_actual,), dtype=jnp.float32)
    return receiver_output, log_prob_r, entropy_r, b_actual


# --------------------------- reference (pure JAX) -----------------------------
def reference_forward(message, params):
    hp = jax.lax.Precision.HIGHEST
    b_actual = message.shape[0]
    emb = jnp.take(params["embedding"], message, axis=0)
    lengths = find_lengths(message)
    h = jnp.zeros((b_actual, H), jnp.float32)
    h_sel = jnp.zeros((b_actual, H), jnp.float32)
    for t in range(T):
        x_t = emb[:, t, :]
        g_x = jnp.dot(x_t, params["w_ih"], precision=hp) + params["b_ih"]
        g_h = jnp.dot(h, params["w_hh"], precision=hp) + params["b_hh"]
        r = jax.nn.sigmoid(g_x[:, :H] + g_h[:, :H])
        z = jax.nn.sigmoid(g_x[:, H:2 * H] + g_h[:, H:2 * H])
        n = jnp.tanh(g_x[:, 2 * H:] + r * g_h[:, 2 * H:])
        h = (1.0 - z) * n + z * h
        h_sel = jnp.where((lengths == (t + 1))[:, None], h, h_sel)
    out = jnp.dot(h_sel, params["w_out"], precision=hp) + params["b_out"]
    return out.reshape(b_actual, N_ATTR, N_VAL)


# ----------------------------------- main -------------------------------------
if __name__ == "__main__":
    key = jax.random.PRNGKey(0)
    keys = jax.random.split(key, 8)

    params = {
        "embedding": 0.1 * jax.random.normal(keys[0], (VOCAB, E), jnp.float32),
        "w_ih": 0.1 * jax.random.normal(keys[1], (E, 3 * H), jnp.float32),
        "w_hh": 0.1 * jax.random.normal(keys[2], (H, 3 * H), jnp.float32),
        "b_ih": 0.1 * jax.random.normal(keys[3], (1, 3 * H), jnp.float32),
        "b_hh": 0.1 * jax.random.normal(keys[4], (1, 3 * H), jnp.float32),
        "w_out": 0.1 * jax.random.normal(keys[5], (H, OUT), jnp.float32),
        "b_out": 0.1 * jax.random.normal(keys[6], (1, OUT), jnp.float32),
    }
    w_slab = jax.block_until_ready(prepare_kernel_params(params))

    # message: (B, T) ints in [1, VOCAB); insert EOS (0) at various positions.
    message = jax.random.randint(keys[7], (B, T), 1, VOCAB, dtype=jnp.int32)
    message = message.at[0, 5].set(0)    # length 6
    message = message.at[3, 2].set(0)    # length 3
    message = message.at[7, 0].set(0)    # length 1
    message = message.at[12, 7].set(0)   # length 8 (EOS at last position)

    receiver_output, log_prob_r, entropy_r, batch_size = jax.block_until_ready(
        rnn_receiver_bc_forward(message, w_slab))

    ref = jax.block_until_ready(reference_forward(message, params))
    assert receiver_output.shape == (B, N_ATTR, N_VAL)
    assert log_prob_r.shape == (B,) and entropy_r.shape == (B,)
    assert batch_size == B
    # tolerance accounts for default MXU precision vs. the HIGHEST-precision
    # f32 reference (structural bugs would show up as O(0.1) errors).
    np.testing.assert_allclose(np.asarray(receiver_output), np.asarray(ref),
                               rtol=1e-2, atol=1e-2)

    print("KERNEL_OK")
</pallas_src>

<mosaic_0001>
module attributes {stable_mosaic.version = 11 : i64} {
  func.func @gru_receiver_kernel(%arg0: i32, %arg1: memref<1x128x128xf32, #tpu.memory_space<vmem>>, %arg2: memref<200x128xf32, #tpu.memory_space<vmem>>, %arg3: memref<16x128xf32, #tpu.memory_space<vmem>>, %arg4: memref<128x128xf32, #tpu.memory_space<vmem>>) attributes {dimension_semantics = [#tpu.dimension_semantics<parallel>], iteration_bounds = array<i64: 1>, scalar_prefetch = 0 : i64, scratch_operands = 1 : i64, tpu.core_type = #tpu.core_type<tc>, window_params = [{transform_indices = @transform_0, window_bounds = array<i64: 1, 128, 128>}, {pipeline_mode = #tpu.pipeline_mode<synchronous>, transform_indices = @transform_1, window_bounds = array<i64: 200, 128>}, {transform_indices = @transform_2, window_bounds = array<i64: 16, 128>}]} {
    %c0 = arith.constant 0 : index
    %c0_0 = arith.constant 0 : index
    %c0_1 = arith.constant 0 : index
    %0 = vector.load %arg1[%c0, %c0_0, %c0_1] : memref<1x128x128xf32, #tpu.memory_space<vmem>>, vector<1x128x128xf32>
    %1 = vector.shape_cast %0 : vector<1x128x128xf32> to vector<128x128xf32>
    %c0_2 = arith.constant 0 : index
    %c0_3 = arith.constant 0 : index
    %2 = vector.load %arg2[%c0_2, %c0_3] : memref<200x128xf32, #tpu.memory_space<vmem>>, vector<128x128xf32>
    %cst = arith.constant dense<0.000000e+00> : vector<128x128xf32>
    %3 = tpu.matmul %1, %2, %cst {dimension_numbers = #tpu.dot_dimension_numbers<[1], [0], [0], [1], [0, 0, 1, 1], [], []>} : vector<128x128xf32>, vector<128x128xf32>, vector<128x128xf32> -> vector<128x128xf32>
    %c0_4 = arith.constant 0 : index
    %c0_5 = arith.constant 0 : index
    %4 = vector.load %arg4[%c0_4, %c0_5] : memref<128x128xf32, #tpu.memory_space<vmem>>, vector<128x128xf32>
    tpu.vector_store %arg4[%c0_4, %c0_5], %3 {strides = array<i32>} : memref<128x128xf32, #tpu.memory_space<vmem>>, vector<128x128xf32>,
    %c128 = arith.constant 128 : index
    %c0_6 = arith.constant 0 : index
    %5 = vector.load %arg2[%c128, %c0_6] : memref<200x128xf32, #tpu.memory_space<vmem>>, vector<32x128xf32>
    %c193 = arith.constant 193 : index
    %c0_7 = arith.constant 0 : index
    %6 = vector.load %arg2[%c193, %c0_7] : memref<200x128xf32, #tpu.memory_space<vmem>>, vector<1x32xf32>
    %7 = vector.shape_cast %6 : vector<1x32xf32> to vector<1x32xf32>
    %8 = vector.broadcast %7 : vector<1x32xf32> to vector<16x32xf32>
    %cst_8 = arith.constant 0.000000e+00 : f32
    %9 = vector.broadcast %cst_8 : f32 to vector<16x32xf32>
    %c0_i32 = arith.constant 0 : i32
    %c16_i32 = arith.constant 16 : i32
    %10 = arith.muli %c0_i32, %c16_i32 : i32
    %11 = tpu.assume_multiple %10, 16 : i32
    %12 = arith.index_cast %11 : i32 to index
    %c0_9 = arith.constant 0 : index
    %13 = vector.load %arg4[%12, %c0_9] : memref<128x128xf32, #tpu.memory_space<vmem>>, vector<16x128xf32>
    %cst_10 = arith.constant dense<0.000000e+00> : vector<16x128xf32>
    %14 = tpu.matmul %9, %5, %cst_10 {dimension_numbers = #tpu.dot_dimension_numbers<[1], [0], [0], [1], [0, 0, 1, 1], [], []>} : vector<16x32xf32>, vector<32x128xf32>, vector<16x128xf32> -> vector<16x128xf32>
    %15 = vector.extract_strided_slice %13 {offsets = [0, 0], sizes = [16, 32], strides = [1, 1]} : vector<16x128xf32> to vector<16x32xf32>
    %16 = vector.extract_strided_slice %14 {offsets = [0, 0], sizes = [16, 32], strides = [1, 1]} : vector<16x128xf32> to vector<16x32xf32>
    %17 = arith.addf %15, %16 : vector<16x32xf32>
    %18 = arith.negf %17 : vector<16x32xf32>
    %19 = math.exp %18 : vector<16x32xf32>
    %cst_11 = arith.constant 1.000000e+00 : f32
    %20 = vector.broadcast %cst_11 : f32 to vector<16x32xf32>
    %21 = arith.addf %20, %19 : vector<16x32xf32>
    %22 = arith.divf %20, %21 : vector<16x32xf32>
    %23 = vector.extract_strided_slice %13 {offsets = [0, 32], sizes = [16, 32], strides = [1, 1]} : vector<16x128xf32> to vector<16x32xf32>
    %24 = vector.extract_strided_slice %14 {offsets = [0, 32], sizes = [16, 32], strides = [1, 1]} : vector<16x128xf32> to vector<16x32xf32>
    %25 = arith.addf %23, %24 : vector<16x32xf32>
    %26 = arith.negf %25 : vector<16x32xf32>
    %27 = math.exp %26 : vector<16x32xf32>
    %cst_12 = arith.constant 1.000000e+00 : f32
    %28 = vector.broadcast %cst_12 : f32 to vector<16x32xf32>
    %29 = arith.addf %28, %27 : vector<16x32xf32>
    %30 = arith.divf %28, %29 : vector<16x32xf32>
    %31 = vector.extract_strided_slice %13 {offsets = [0, 64], sizes = [16, 32], strides = [1, 1]} : vector<16x128xf32> to vector<16x32xf32>
    %32 = vector.extract_strided_slice %14 {offsets = [0, 64], sizes = [16, 32], strides = [1, 1]} : vector<16x128xf32> to vector<16x32xf32>
    %33 = arith.addf %32, %8 : vector<16x32xf32>
    %34 = arith.mulf %22, %33 : vector<16x32xf32>
    %35 = arith.addf %31, %34 : vector<16x32xf32>
    %36 = math.tanh %35 : vector<16x32xf32>
    %cst_13 = arith.constant 1.000000e+00 : f32
    %37 = vector.broadcast %cst_13 : f32 to vector<16x32xf32>
    %38 = arith.subf %37, %30 : vector<16x32xf32>
    %39 = arith.mulf %38, %36 : vector<16x32xf32>
    %40 = arith.mulf %30, %9 : vector<16x32xf32>
    %41 = arith.addf %39, %40 : vector<16x32xf32>
    %c0_14 = arith.constant 0 : index
    %42 = arith.index_cast %11 : i32 to index
    %c96 = arith.constant 96 : index
    %43 = vector.load %arg1[%c0_14, %42, %c96] : memref<1x128x128xf32, #tpu.memory_space<vmem>>, vector<1x16x32xf32>
    %44 = vector.shape_cast %43 : vector<1x16x32xf32> to vector<16x32xf32>
    %45 = arith.mulf %44, %41 : vector<16x32xf32>
    %46 = arith.addf %9, %45 : vector<16x32xf32>
    %c1_i32 = arith.constant 1 : i32
    %c16_i32_15 = arith.constant 16 : i32
    %47 = arith.muli %c1_i32, %c16_i32_15 : i32
    %48 = tpu.assume_multiple %47, 16 : i32
    %49 = arith.index_cast %48 : i32 to index
    %c0_16 = arith.constant 0 : index
    %50 = vector.load %arg4[%49, %c0_16] : memref<128x128xf32, #tpu.memory_space<vmem>>, vector<16x128xf32>
    %cst_17 = arith.constant dense<0.000000e+00> : vector<16x128xf32>
    %51 = tpu.matmul %41, %5, %cst_17 {dimension_numbers = #tpu.dot_dimension_numbers<[1], [0], [0], [1], [0, 0, 1, 1], [], []>} : vector<16x32xf32>, vector<32x128xf32>, vector<16x128xf32> -> vector<16x128xf32>
    %52 = vector.extract_strided_slice %50 {offsets = [0, 0], sizes = [16, 32], strides = [1, 1]} : vector<16x128xf32> to vector<16x32xf32>
    %53 = vector.extract_strided_slice %51 {offsets = [0, 0], sizes = [16, 32], strides = [1, 1]} : vector<16x128xf32> to vector<16x32xf32>
    %54 = arith.addf %52, %53 : vector<16x32xf32>
    %55 = arith.negf %54 : vector<16x32xf32>
    %56 = math.exp %55 : vector<16x32xf32>
    %cst_18 = arith.constant 1.000000e+00 : f32
    %57 = vector.broadcast %cst_18 : f32 to vector<16x32xf32>
    %58 = arith.addf %57, %56 : vector<16x32xf32>
    %59 = arith.divf %57, %58 : vector<16x32xf32>
    %60 = vector.extract_strided_slice %50 {offsets = [0, 32], sizes = [16, 32], strides = [1, 1]} : vector<16x128xf32> to vector<16x32xf32>
    %61 = vector.extract_strided_slice %51 {offsets = [0, 32], sizes = [16, 32], strides = [1, 1]} : vector<16x128xf32> to vector<16x32xf32>
    %62 = arith.addf %60, %61 : vector<16x32xf32>
    %63 = arith.negf %62 : vector<16x32xf32>
    %64 = math.exp %63 : vector<16x32xf32>
    %cst_19 = arith.constant 1.000000e+00 : f32
    %65 = vector.broadcast %cst_19 : f32 to vector<16x32xf32>
    %66 = arith.addf %65, %64 : vector<16x32xf32>
    %67 = arith.divf %65, %66 : vector<16x32xf32>
    %68 = vector.extract_strided_slice %50 {offsets = [0, 64], sizes = [16, 32], strides = [1, 1]} : vector<16x128xf32> to vector<16x32xf32>
    %69 = vector.extract_strided_slice %51 {offsets = [0, 64], sizes = [16, 32], strides = [1, 1]} : vector<16x128xf32> to vector<16x32xf32>
    %70 = arith.addf %69, %8 : vector<16x32xf32>
    %71 = arith.mulf %59, %70 : vector<16x32xf32>
    %72 = arith.addf %68, %71 : vector<16x32xf32>
    %73 = math.tanh %72 : vector<16x32xf32>
    %cst_20 = arith.constant 1.000000e+00 : f32
    %74 = vector.broadcast %cst_20 : f32 to vector<16x32xf32>
    %75 = arith.subf %74, %67 : vector<16x32xf32>
    %76 = arith.mulf %75, %73 : vector<16x32xf32>
    %77 = arith.mulf %67, %41 : vector<16x32xf32>
    %78 = arith.addf %76, %77 : vector<16x32xf32>
    %c0_21 = arith.constant 0 : index
    %79 = arith.index_cast %48 : i32 to index
    %c96_22 = arith.constant 96 : index
    %80 = vector.load %arg1[%c0_21, %79, %c96_22] : memref<1x128x128xf32, #tpu.memory_space<vmem>>, vector<1x16x32xf32>
    %81 = vector.shape_cast %80 : vector<1x16x32xf32> to vector<16x32xf32>
    %82 = arith.mulf %81, %78 : vector<16x32xf32>
    %83 = arith.addf %46, %82 : vector<16x32xf32>
    %c2_i32 = arith.constant 2 : i32
    %c16_i32_23 = arith.constant 16 : i32
    %84 = arith.muli %c2_i32, %c16_i32_23 : i32
    %85 = tpu.assume_multiple %84, 16 : i32
    %86 = arith.index_cast %85 : i32 to index
    %c0_24 = arith.constant 0 : index
    %87 = vector.load %arg4[%86, %c0_24] : memref<128x128xf32, #tpu.memory_space<vmem>>, vector<16x128xf32>
    %cst_25 = arith.constant dense<0.000000e+00> : vector<16x128xf32>
    %88 = tpu.matmul %78, %5, %cst_25 {dimension_numbers = #tpu.dot_dimension_numbers<[1], [0], [0], [1], [0, 0, 1, 1], [], []>} : vector<16x32xf32>, vector<32x128xf32>, vector<16x128xf32> -> vector<16x128xf32>
    %89 = vector.extract_strided_slice %87 {offsets = [0, 0], sizes = [16, 32], strides = [1, 1]} : vector<16x128xf32> to vector<16x32xf32>
    %90 = vector.extract_strided_slice %88 {offsets = [0, 0], sizes = [16, 32], strides = [1, 1]} : vector<16x128xf32> to vector<16x32xf32>
    %91 = arith.addf %89, %90 : vector<16x32xf32>
    %92 = arith.negf %91 : vector<16x32xf32>
    %93 = math.exp %92 : vector<16x32xf32>
    %cst_26 = arith.constant 1.000000e+00 : f32
    %94 = vector.broadcast %cst_26 : f32 to vector<16x32xf32>
    %95 = arith.addf %94, %93 : vector<16x32xf32>
    %96 = arith.divf %94, %95 : vector<16x32xf32>
    %97 = vector.extract_strided_slice %87 {offsets = [0, 32], sizes = [16, 32], strides = [1, 1]} : vector<16x128xf32> to vector<16x32xf32>
    %98 = vector.extract_strided_slice %88 {offsets = [0, 32], sizes = [16, 32], strides = [1, 1]} : vector<16x128xf32> to vector<16x32xf32>
    %99 = arith.addf %97, %98 : vector<16x32xf32>
    %100 = arith.negf %99 : vector<16x32xf32>
    %101 = math.exp %100 : vector<16x32xf32>
    %cst_27 = arith.constant 1.000000e+00 : f32
    %102 = vector.broadcast %cst_27 : f32 to vector<16x32xf32>
    %103 = arith.addf %102, %101 : vector<16x32xf32>
    %104 = arith.divf %102, %103 : vector<16x32xf32>
    %105 = vector.extract_strided_slice %87 {offsets = [0, 64], sizes = [16, 32], strides = [1, 1]} : vector<16x128xf32> to vector<16x32xf32>
    %106 = vector.extract_strided_slice %88 {offsets = [0, 64], sizes = [16, 32], strides = [1, 1]} : vector<16x128xf32> to vector<16x32xf32>
    %107 = arith.addf %106, %8 : vector<16x32xf32>
    %108 = arith.mulf %96, %107 : vector<16x32xf32>
    %109 = arith.addf %105, %108 : vector<16x32xf32>
    %110 = math.tanh %109 : vector<16x32xf32>
    %cst_28 = arith.constant 1.000000e+00 : f32
    %111 = vector.broadcast %cst_28 : f32 to vector<16x32xf32>
    %112 = arith.subf %111, %104 : vector<16x32xf32>
    %113 = arith.mulf %112, %110 : vector<16x32xf32>
    %114 = arith.mulf %104, %78 : vector<16x32xf32>
    %115 = arith.addf %113, %114 : vector<16x32xf32>
    %c0_29 = arith.constant 0 : index
    %116 = arith.index_cast %85 : i32 to index
    %c96_30 = arith.constant 96 : index
    %117 = vector.load %arg1[%c0_29, %116, %c96_30] : memref<1x128x128xf32, #tpu.memory_space<vmem>>, vector<1x16x32xf32>
    %118 = vector.shape_cast %117 : vector<1x16x32xf32> to vector<16x32xf32>
    %119 = arith.mulf %118, %115 : vector<16x32xf32>
    %120 = arith.addf %83, %119 : vector<16x32xf32>
    %c3_i32 = arith.constant 3 : i32
    %c16_i32_31 = arith.constant 16 : i32
    %121 = arith.muli %c3_i32, %c16_i32_31 : i32
    %122 = tpu.assume_multiple %121, 16 : i32
    %123 = arith.index_cast %122 : i32 to index
    %c0_32 = arith.constant 0 : index
    %124 = vector.load %arg4[%123, %c0_32] : memref<128x128xf32, #tpu.memory_space<vmem>>, vector<16x128xf32>
    %cst_33 = arith.constant dense<0.000000e+00> : vector<16x128xf32>
    %125 = tpu.matmul %115, %5, %cst_33 {dimension_numbers = #tpu.dot_dimension_numbers<[1], [0], [0], [1], [0, 0, 1, 1], [], []>} : vector<16x32xf32>, vector<32x128xf32>, vector<16x128xf32> -> vector<16x128xf32>
    %126 = vector.extract_strided_slice %124 {offsets = [0, 0], sizes = [16, 32], strides = [1, 1]} : vector<16x128xf32> to vector<16x32xf32>
    %127 = vector.extract_strided_slice %125 {offsets = [0, 0], sizes = [16, 32], strides = [1, 1]} : vector<16x128xf32> to vector<16x32xf32>
    %128 = arith.addf %126, %127 : vector<16x32xf32>
    %129 = arith.negf %128 : vector<16x32xf32>
    %130 = math.exp %129 : vector<16x32xf32>
    %cst_34 = arith.constant 1.000000e+00 : f32
    %131 = vector.broadcast %cst_34 : f32 to vector<16x32xf32>
    %132 = arith.addf %131, %130 : vector<16x32xf32>
    %133 = arith.divf %131, %132 : vector<16x32xf32>
    %134 = vector.extract_strided_slice %124 {offsets = [0, 32], sizes = [16, 32], strides = [1, 1]} : vector<16x128xf32> to vector<16x32xf32>
    %135 = vector.extract_strided_slice %125 {offsets = [0, 32], sizes = [16, 32], strides = [1, 1]} : vector<16x128xf32> to vector<16x32xf32>
    %136 = arith.addf %134, %135 : vector<16x32xf32>
    %137 = arith.negf %136 : vector<16x32xf32>
    %138 = math.exp %137 : vector<16x32xf32>
    %cst_35 = arith.constant 1.000000e+00 : f32
    %139 = vector.broadcast %cst_35 : f32 to vector<16x32xf32>
    %140 = arith.addf %139, %138 : vector<16x32xf32>
    %141 = arith.divf %139, %140 : vector<16x32xf32>
    %142 = vector.extract_strided_slice %124 {offsets = [0, 64], sizes = [16, 32], strides = [1, 1]} : vector<16x128xf32> to vector<16x32xf32>
    %143 = vector.extract_strided_slice %125 {offsets = [0, 64], sizes = [16, 32], strides = [1, 1]} : vector<16x128xf32> to vector<16x32xf32>
    %144 = arith.addf %143, %8 : vector<16x32xf32>
    %145 = arith.mulf %133, %144 : vector<16x32xf32>
    %146 = arith.addf %142, %145 : vector<16x32xf32>
    %147 = math.tanh %146 : vector<16x32xf32>
    %cst_36 = arith.constant 1.000000e+00 : f32
    %148 = vector.broadcast %cst_36 : f32 to vector<16x32xf32>
    %149 = arith.subf %148, %141 : vector<16x32xf32>
    %150 = arith.mulf %149, %147 : vector<16x32xf32>
    %151 = arith.mulf %141, %115 : vector<16x32xf32>
    %152 = arith.addf %150, %151 : vector<16x32xf32>
    %c0_37 = arith.constant 0 : index
    %153 = arith.index_cast %122 : i32 to index
    %c96_38 = arith.constant 96 : index
    %154 = vector.load %arg1[%c0_37, %153, %c96_38] : memref<1x128x128xf32, #tpu.memory_space<vmem>>, vector<1x16x32xf32>
    %155 = vector.shape_cast %154 : vector<1x16x32xf32> to vector<16x32xf32>
    %156 = arith.mulf %155, %152 : vector<16x32xf32>
    %157 = arith.addf %120, %156 : vector<16x32xf32>
    %c4_i32 = arith.constant 4 : i32
    %c16_i32_39 = arith.constant 16 : i32
    %158 = arith.muli %c4_i32, %c16_i32_39 : i32
    %159 = tpu.assume_multiple %158, 16 : i32
    %160 = arith.index_cast %159 : i32 to index
    %c0_40 = arith.constant 0 : index
    %161 = vector.load %arg4[%160, %c0_40] : memref<128x128xf32, #tpu.memory_space<vmem>>, vector<16x128xf32>
    %cst_41 = arith.constant dense<0.000000e+00> : vector<16x128xf32>
    %162 = tpu.matmul %152, %5, %cst_41 {dimension_numbers = #tpu.dot_dimension_numbers<[1], [0], [0], [1], [0, 0, 1, 1], [], []>} : vector<16x32xf32>, vector<32x128xf32>, vector<16x128xf32> -> vector<16x128xf32>
    %163 = vector.extract_strided_slice %161 {offsets = [0, 0], sizes = [16, 32], strides = [1, 1]} : vector<16x128xf32> to vector<16x32xf32>
    %164 = vector.extract_strided_slice %162 {offsets = [0, 0], sizes = [16, 32], strides = [1, 1]} : vector<16x128xf32> to vector<16x32xf32>
    %165 = arith.addf %163, %164 : vector<16x32xf32>
    %166 = arith.negf %165 : vector<16x32xf32>
    %167 = math.exp %166 : vector<16x32xf32>
    %cst_42 = arith.constant 1.000000e+00 : f32
    %168 = vector.broadcast %cst_42 : f32 to vector<16x32xf32>
    %169 = arith.addf %168, %167 : vector<16x32xf32>
    %170 = arith.divf %168, %169 : vector<16x32xf32>
    %171 = vector.extract_strided_slice %161 {offsets = [0, 32], sizes = [16, 32], strides = [1, 1]} : vector<16x128xf32> to vector<16x32xf32>
    %172 = vector.extract_strided_slice %162 {offsets = [0, 32], sizes = [16, 32], strides = [1, 1]} : vector<16x128xf32> to vector<16x32xf32>
    %173 = arith.addf %171, %172 : vector<16x32xf32>
    %174 = arith.negf %173 : vector<16x32xf32>
    %175 = math.exp %174 : vector<16x32xf32>
    %cst_43 = arith.constant 1.000000e+00 : f32
    %176 = vector.broadcast %cst_43 : f32 to vector<16x32xf32>
    %177 = arith.addf %176, %175 : vector<16x32xf32>
    %178 = arith.divf %176, %177 : vector<16x32xf32>
    %179 = vector.extract_strided_slice %161 {offsets = [0, 64], sizes = [16, 32], strides = [1, 1]} : vector<16x128xf32> to vector<16x32xf32>
    %180 = vector.extract_strided_slice %162 {offsets = [0, 64], sizes = [16, 32], strides = [1, 1]} : vector<16x128xf32> to vector<16x32xf32>
    %181 = arith.addf %180, %8 : vector<16x32xf32>
    %182 = arith.mulf %170, %181 : vector<16x32xf32>
    %183 = arith.addf %179, %182 : vector<16x32xf32>
    %184 = math.tanh %183 : vector<16x32xf32>
    %cst_44 = arith.constant 1.000000e+00 : f32
    %185 = vector.broadcast %cst_44 : f32 to vector<16x32xf32>
    %186 = arith.subf %185, %178 : vector<16x32xf32>
    %187 = arith.mulf %186, %184 : vector<16x32xf32>
    %188 = arith.mulf %178, %152 : vector<16x32xf32>
    %189 = arith.addf %187, %188 : vector<16x32xf32>
    %c0_45 = arith.constant 0 : index
    %190 = arith.index_cast %159 : i32 to index
    %c96_46 = arith.constant 96 : index
    %191 = vector.load %arg1[%c0_45, %190, %c96_46] : memref<1x128x128xf32, #tpu.memory_space<vmem>>, vector<1x16x32xf32>
    %192 = vector.shape_cast %191 : vector<1x16x32xf32> to vector<16x32xf32>
    %193 = arith.mulf %192, %189 : vector<16x32xf32>
    %194 = arith.addf %157, %193 : vector<16x32xf32>
    %c5_i32 = arith.constant 5 : i32
    %c16_i32_47 = arith.constant 16 : i32
    %195 = arith.muli %c5_i32, %c16_i32_47 : i32
    %196 = tpu.assume_multiple %195, 16 : i32
    %197 = arith.index_cast %196 : i32 to index
    %c0_48 = arith.constant 0 : index
    %198 = vector.load %arg4[%197, %c0_48] : memref<128x128xf32, #tpu.memory_space<vmem>>, vector<16x128xf32>
    %cst_49 = arith.constant dense<0.000000e+00> : vector<16x128xf32>
    %199 = tpu.matmul %189, %5, %cst_49 {dimension_numbers = #tpu.dot_dimension_numbers<[1], [0], [0], [1], [0, 0, 1, 1], [], []>} : vector<16x32xf32>, vector<32x128xf32>, vector<16x128xf32> -> vector<16x128xf32>
    %200 = vector.extract_strided_slice %198 {offsets = [0, 0], sizes = [16, 32], strides = [1, 1]} : vector<16x128xf32> to vector<16x32xf32>
    %201 = vector.extract_strided_slice %199 {offsets = [0, 0], sizes = [16, 32], strides = [1, 1]} : vector<16x128xf32> to vector<16x32xf32>
    %202 = arith.addf %200, %201 : vector<16x32xf32>
    %203 = arith.negf %202 : vector<16x32xf32>
    %204 = math.exp %203 : vector<16x32xf32>
    %cst_50 = arith.constant 1.000000e+00 : f32
    %205 = vector.broadcast %cst_50 : f32 to vector<16x32xf32>
    %206 = arith.addf %205, %204 : vector<16x32xf32>
    %207 = arith.divf %205, %206 : vector<16x32xf32>
    %208 = vector.extract_strided_slice %198 {offsets = [0, 32], sizes = [16, 32], strides = [1, 1]} : vector<16x128xf32> to vector<16x32xf32>
    %209 = vector.extract_strided_slice %199 {offsets = [0, 32], sizes = [16, 32], strides = [1, 1]} : vector<16x128xf32> to vector<16x32xf32>
    %210 = arith.addf %208, %209 : vector<16x32xf32>
    %211 = arith.negf %210 : vector<16x32xf32>
    %212 = math.exp %211 : vector<16x32xf32>
    %cst_51 = arith.constant 1.000000e+00 : f32
    %213 = vector.broadcast %cst_51 : f32 to vector<16x32xf32>
    %214 = arith.addf %213, %212 : vector<16x32xf32>
    %215 = arith.divf %213, %214 : vector<16x32xf32>
    %216 = vector.extract_strided_slice %198 {offsets = [0, 64], sizes = [16, 32], strides = [1, 1]} : vector<16x128xf32> to vector<16x32xf32>
    %217 = vector.extract_strided_slice %199 {offsets = [0, 64], sizes = [16, 32], strides = [1, 1]} : vector<16x128xf32> to vector<16x32xf32>
    %218 = arith.addf %217, %8 : vector<16x32xf32>
    %219 = arith.mulf %207, %218 : vector<16x32xf32>
    %220 = arith.addf %216, %219 : vector<16x32xf32>
    %221 = math.tanh %220 : vector<16x32xf32>
    %cst_52 = arith.constant 1.000000e+00 : f32
    %222 = vector.broadcast %cst_52 : f32 to vector<16x32xf32>
    %223 = arith.subf %222, %215 : vector<16x32xf32>
    %224 = arith.mulf %223, %221 : vector<16x32xf32>
    %225 = arith.mulf %215, %189 : vector<16x32xf32>
    %226 = arith.addf %224, %225 : vector<16x32xf32>
    %c0_53 = arith.constant 0 : index
    %227 = arith.index_cast %196 : i32 to index
    %c96_54 = arith.constant 96 : index
    %228 = vector.load %arg1[%c0_53, %227, %c96_54] : memref<1x128x128xf32, #tpu.memory_space<vmem>>, vector<1x16x32xf32>
    %229 = vector.shape_cast %228 : vector<1x16x32xf32> to vector<16x32xf32>
    %230 = arith.mulf %229, %226 : vector<16x32xf32>
    %231 = arith.addf %194, %230 : vector<16x32xf32>
    %c6_i32 = arith.constant 6 : i32
    %c16_i32_55 = arith.constant 16 : i32
    %232 = arith.muli %c6_i32, %c16_i32_55 : i32
    %233 = tpu.assume_multiple %232, 16 : i32
    %234 = arith.index_cast %233 : i32 to index
    %c0_56 = arith.constant 0 : index
    %235 = vector.load %arg4[%234, %c0_56] : memref<128x128xf32, #tpu.memory_space<vmem>>, vector<16x128xf32>
    %cst_57 = arith.constant dense<0.000000e+00> : vector<16x128xf32>
    %236 = tpu.matmul %226, %5, %cst_57 {dimension_numbers = #tpu.dot_dimension_numbers<[1], [0], [0], [1], [0, 0, 1, 1], [], []>} : vector<16x32xf32>, vector<32x128xf32>, vector<16x128xf32> -> vector<16x128xf32>
    %237 = vector.extract_strided_slice %235 {offsets = [0, 0], sizes = [16, 32], strides = [1, 1]} : vector<16x128xf32> to vector<16x32xf32>
    %238 = vector.extract_strided_slice %236 {offsets = [0, 0], sizes = [16, 32], strides = [1, 1]} : vector<16x128xf32> to vector<16x32xf32>
    %239 = arith.addf %237, %238 : vector<16x32xf32>
    %240 = arith.negf %239 : vector<16x32xf32>
    %241 = math.exp %240 : vector<16x32xf32>
    %cst_58 = arith.constant 1.000000e+00 : f32
    %242 = vector.broadcast %cst_58 : f32 to vector<16x32xf32>
    %243 = arith.addf %242, %241 : vector<16x32xf32>
    %244 = arith.divf %242, %243 : vector<16x32xf32>
    %245 = vector.extract_strided_slice %235 {offsets = [0, 32], sizes = [16, 32], strides = [1, 1]} : vector<16x128xf32> to vector<16x32xf32>
    %246 = vector.extract_strided_slice %236 {offsets = [0, 32], sizes = [16, 32], strides = [1, 1]} : vector<16x128xf32> to vector<16x32xf32>
    %247 = arith.addf %245, %246 : vector<16x32xf32>
    %248 = arith.negf %247 : vector<16x32xf32>
    %249 = math.exp %248 : vector<16x32xf32>
    %cst_59 = arith.constant 1.000000e+00 : f32
    %250 = vector.broadcast %cst_59 : f32 to vector<16x32xf32>
    %251 = arith.addf %250, %249 : vector<16x32xf32>
    %252 = arith.divf %250, %251 : vector<16x32xf32>
    %253 = vector.extract_strided_slice %235 {offsets = [0, 64], sizes = [16, 32], strides = [1, 1]} : vector<16x128xf32> to vector<16x32xf32>
    %254 = vector.extract_strided_slice %236 {offsets = [0, 64], sizes = [16, 32], strides = [1, 1]} : vector<16x128xf32> to vector<16x32xf32>
    %255 = arith.addf %254, %8 : vector<16x32xf32>
    %256 = arith.mulf %244, %255 : vector<16x32xf32>
    %257 = arith.addf %253, %256 : vector<16x32xf32>
    %258 = math.tanh %257 : vector<16x32xf32>
    %cst_60 = arith.constant 1.000000e+00 : f32
    %259 = vector.broadcast %cst_60 : f32 to vector<16x32xf32>
    %260 = arith.subf %259, %252 : vector<16x32xf32>
    %261 = arith.mulf %260, %258 : vector<16x32xf32>
    %262 = arith.mulf %252, %226 : vector<16x32xf32>
    %263 = arith.addf %261, %262 : vector<16x32xf32>
    %c0_61 = arith.constant 0 : index
    %264 = arith.index_cast %233 : i32 to index
    %c96_62 = arith.constant 96 : index
    %265 = vector.load %arg1[%c0_61, %264, %c96_62] : memref<1x128x128xf32, #tpu.memory_space<vmem>>, vector<1x16x32xf32>
    %266 = vector.shape_cast %265 : vector<1x16x32xf32> to vector<16x32xf32>
    %267 = arith.mulf %266, %263 : vector<16x32xf32>
    %268 = arith.addf %231, %267 : vector<16x32xf32>
    %c7_i32 = arith.constant 7 : i32
    %c16_i32_63 = arith.constant 16 : i32
    %269 = arith.muli %c7_i32, %c16_i32_63 : i32
    %270 = tpu.assume_multiple %269, 16 : i32
    %271 = arith.index_cast %270 : i32 to index
    %c0_64 = arith.constant 0 : index
    %272 = vector.load %arg4[%271, %c0_64] : memref<128x128xf32, #tpu.memory_space<vmem>>, vector<16x128xf32>
    %cst_65 = arith.constant dense<0.000000e+00> : vector<16x128xf32>
    %273 = tpu.matmul %263, %5, %cst_65 {dimension_numbers = #tpu.dot_dimension_numbers<[1], [0], [0], [1], [0, 0, 1, 1], [], []>} : vector<16x32xf32>, vector<32x128xf32>, vector<16x128xf32> -> vector<16x128xf32>
    %274 = vector.extract_strided_slice %272 {offsets = [0, 0], sizes = [16, 32], strides = [1, 1]} : vector<16x128xf32> to vector<16x32xf32>
    %275 = vector.extract_strided_slice %273 {offsets = [0, 0], sizes = [16, 32], strides = [1, 1]} : vector<16x128xf32> to vector<16x32xf32>
    %276 = arith.addf %274, %275 : vector<16x32xf32>
    %277 = arith.negf %276 : vector<16x32xf32>
    %278 = math.exp %277 : vector<16x32xf32>
    %cst_66 = arith.constant 1.000000e+00 : f32
    %279 = vector.broadcast %cst_66 : f32 to vector<16x32xf32>
    %280 = arith.addf %279, %278 : vector<16x32xf32>
    %281 = arith.divf %279, %280 : vector<16x32xf32>
    %282 = vector.extract_strided_slice %272 {offsets = [0, 32], sizes = [16, 32], strides = [1, 1]} : vector<16x128xf32> to vector<16x32xf32>
    %283 = vector.extract_strided_slice %273 {offsets = [0, 32], sizes = [16, 32], strides = [1, 1]} : vector<16x128xf32> to vector<16x32xf32>
    %284 = arith.addf %282, %283 : vector<16x32xf32>
    %285 = arith.negf %284 : vector<16x32xf32>
    %286 = math.exp %285 : vector<16x32xf32>
    %cst_67 = arith.constant 1.000000e+00 : f32
    %287 = vector.broadcast %cst_67 : f32 to vector<16x32xf32>
    %288 = arith.addf %287, %286 : vector<16x32xf32>
    %289 = arith.divf %287, %288 : vector<16x32xf32>
    %290 = vector.extract_strided_slice %272 {offsets = [0, 64], sizes = [16, 32], strides = [1, 1]} : vector<16x128xf32> to vector<16x32xf32>
    %291 = vector.extract_strided_slice %273 {offsets = [0, 64], sizes = [16, 32], strides = [1, 1]} : vector<16x128xf32> to vector<16x32xf32>
    %292 = arith.addf %291, %8 : vector<16x32xf32>
    %293 = arith.mulf %281, %292 : vector<16x32xf32>
    %294 = arith.addf %290, %293 : vector<16x32xf32>
    %295 = math.tanh %294 : vector<16x32xf32>
    %cst_68 = arith.constant 1.000000e+00 : f32
    %296 = vector.broadcast %cst_68 : f32 to vector<16x32xf32>
    %297 = arith.subf %296, %289 : vector<16x32xf32>
    %298 = arith.mulf %297, %295 : vector<16x32xf32>
    %299 = arith.mulf %289, %263 : vector<16x32xf32>
    %300 = arith.addf %298, %299 : vector<16x32xf32>
    %c0_69 = arith.constant 0 : index
    %301 = arith.index_cast %270 : i32 to index
    %c96_70 = arith.constant 96 : index
    %302 = vector.load %arg1[%c0_69, %301, %c96_70] : memref<1x128x128xf32, #tpu.memory_space<vmem>>, vector<1x16x32xf32>
    %303 = vector.shape_cast %302 : vector<1x16x32xf32> to vector<16x32xf32>
    %304 = arith.mulf %303, %300 : vector<16x32xf32>
    %305 = arith.addf %268, %304 : vector<16x32xf32>
    %c8_i32 = arith.constant 8 : i32
    %c160 = arith.constant 160 : index
    %c0_71 = arith.constant 0 : index
    %306 = vector.load %arg2[%c160, %c0_71] : memref<200x128xf32, #tpu.memory_space<vmem>>, vector<32x128xf32>
    %cst_72 = arith.constant dense<0.000000e+00> : vector<16x128xf32>
    %307 = tpu.matmul %305, %306, %cst_72 {dimension_numbers = #tpu.dot_dimension_numbers<[1], [0], [0], [1], [0, 0, 1, 1], [], []>} : vector<16x32xf32>, vector<32x128xf32>, vector<16x128xf32> -> vector<16x128xf32>
    %c192 = arith.constant 192 : index
    %c0_73 = arith.constant 0 : index
    %308 = vector.load %arg2[%c192, %c0_73] : memref<200x128xf32, #tpu.memory_space<vmem>>, vector<1x128xf32>
    %309 = vector.broadcast %308 : vector<1x128xf32> to vector<16x128xf32>
    %310 = arith.addf %307, %309 : vector<16x128xf32>
    %c0_74 = arith.constant 0 : index
    %c0_75 = arith.constant 0 : index
    %311 = vector.load %arg3[%c0_74, %c0_75] : memref<16x128xf32, #tpu.memory_space<vmem>>, vector<16x128xf32>
    tpu.vector_store %arg3[%c0_74, %c0_75], %310 {strides = array<i32>} : memref<16x128xf32, #tpu.memory_space<vmem>>, vector<16x128xf32>,
    return
  }
  func.func @transform_0(%arg0: i32) -> (i32, i32, i32) {
    %c0_i32 = arith.constant 0 : i32
    %c0_i32_0 = arith.constant 0 : i32
    %c0_i32_1 = arith.constant 0 : i32
    return %arg0, %c0_i32, %c0_i32_0 : i32, i32, i32
  }
  func.func @transform_1(%arg0: i32) -> (i32, i32) {
    %c0_i32 = arith.constant 0 : i32
    %c0_i32_0 = arith.constant 0 : i32
    %c0_i32_1 = arith.constant 0 : i32
    return %c0_i32, %c0_i32_0 : i32, i32
  }
  func.func @transform_2(%arg0: i32) -> (i32, i32) {
    %c0_i32 = arith.constant 0 : i32
    %c0_i32_0 = arith.constant 0 : i32
    return %arg0, %c0_i32 : i32, i32
  }
}

</mosaic_0001>

<llo_original>
// kernel: tpu_custom_call.1
$region0: #{tpu_custom_call.1}
  #allocation0 [shape = 'u32[]', space=smem, size = 0x4, offset = 0x4, fixed_abs, tag = 'smem constant byte address 0x4 - core index']
  #allocation1 [shape = 'u32[144,128]{1,0:T(1,128)}', space=vmem, size = 0x12000, scoped, tag = 'internal scratch']
  #allocation2 [shape = 'f32[128,128]{1,0:T(8,128)}', space=vmem, size = 0x10000, scoped, tag = 'scratch operand']
  %s0 = inlined_call_operand.hbm [shape: f32[1,128,128], index: 0, kind: input, shape index: {}]
  %s1 = inlined_call_operand.hbm [shape: f32[200,128], index: 1, kind: input, shape index: {}]
  %s2 = inlined_call_operand.hbm [shape: f32[16,128], index: 2, kind: output, shape index: {}]
  %s3 = sld [smem:[#allocation0]]
  $region26: #{tpu_custom_call.1} parent=0
    _
  %s5 = ssub.s32 1, %s3
  %s6 = scalar_select 0, %s5, %s3
  $region1: #{tpu_custom_call.1} parent=0
    #allocation3 [shape = 'u8[65536]{0}', space=vmem, size = 0x10000, scoped, tag = 'input window, operand 0, single buffered']
    #allocation4 [shape = 's32[1]{0}', space=sflag, size = 0x4, scoped, tag = 'scoped memory for tpu_custom_call.1']
    #allocation5 [shape = 's32[1]{0}', space=sflag, size = 0x4, scoped, tag = 'scoped memory for tpu_custom_call.1']
    #allocation6 [shape = 'u8[102400]{0}', space=vmem, size = 0x19000, scoped, tag = 'input window, operand 1, single buffered']
    #allocation7 [shape = 's32[1]{0}', space=sflag, size = 0x4, scoped, tag = 'scoped memory for tpu_custom_call.1']
    #allocation8 [shape = 'u8[8192]{0}', space=vmem, size = 0x2000, scoped, tag = 'output window, operand 0, single buffered']
    %7 = vsyncpa [#allocation4], 0
    %8 = vsyncpa [#allocation7], 0
    %9 = vsyncpa [#allocation5], 0
    // Predicated region
    $region2: #{tpu_custom_call.1} parent=1 // pred_check
      _
    $region3: #{tpu_custom_call.1} parent=1 // pred_check_branch
      %11 = sbr.rel (0) target = $region5
    $region4: #{tpu_custom_call.1} parent=1 // pred_region
      %s13 = ssub.s32 2048, 2048
      %14 = vsyncadd [#allocation4], %s13
      %s15 = sshll.u32 [#allocation3], 4
      %s16 = int_to_ptr.vmem [resolvable:$true] %s15
      %21 = dma.hbm_to_vmem [thread:$0]  %s0, 2048, %s16, [#allocation4], 128, 128, 8
    $region5: #{tpu_custom_call.1} parent=1 // pred_fallthru
      _
    // Predicated region
    $region6: #{tpu_custom_call.1} parent=1 // pred_check
      _
    $region7: #{tpu_custom_call.1} parent=1 // pred_check_branch
      %23 = sbr.rel (0) target = $region9
    $region8: #{tpu_custom_call.1} parent=1 // pred_region
      %s25 = ssub.s32 3200, 3200
      %26 = vsyncadd [#allocation7], %s25
      %s27 = sshll.u32 [#allocation6], 4
      %s28 = int_to_ptr.vmem [resolvable:$true] %s27
      %33 = dma.hbm_to_vmem [thread:$0]  %s1, 3200, %s28, [#allocation7], 128, 128, 8
    $region9: #{tpu_custom_call.1} parent=1 // pred_fallthru
      _
    // Predicated region
    $region10: #{tpu_custom_call.1} parent=1 // pred_check
      _
    $region11: #{tpu_custom_call.1} parent=1 // pred_check_branch
      %35 = sbr.rel (0) target = $region13
    $region12: #{tpu_custom_call.1} parent=1 // pred_region
      %36 = dma.done [#allocation4], 2048
    $region13: #{tpu_custom_call.1} parent=1 // pred_fallthru
      _
    // Predicated region
    $region14: #{tpu_custom_call.1} parent=1 // pred_check
      _
    $region15: #{tpu_custom_call.1} parent=1 // pred_check_branch
      %38 = sbr.rel (0) target = $region17
    $region16: #{tpu_custom_call.1} parent=1 // pred_region
      %39 = dma.done [#allocation7], 3200
    $region17: #{tpu_custom_call.1} parent=1 // pred_fallthru
      _
    %v40 = vld [vmem:[#allocation3] sm:$0xff]
    %v41 = vld [vmem:[#allocation3 + $0x8] sm:$0xff]
    %v42 = vld [vmem:[#allocation3 + $0x10] sm:$0xff]
    %v43 = vld [vmem:[#allocation3 + $0x18] sm:$0xff]
    %v44 = vld [vmem:[#allocation3 + $0x20] sm:$0xff]
    %v45 = vld [vmem:[#allocation3 + $0x28] sm:$0xff]
    %v46 = vld [vmem:[#allocation3 + $0x30] sm:$0xff]
    %v47 = vld [vmem:[#allocation3 + $0x38] sm:$0xff]
    %v48 = vld [vmem:[#allocation3 + $0x40] sm:$0xff]
    %v49 = vld [vmem:[#allocation3 + $0x48] sm:$0xff]
    %v50 = vld [vmem:[#allocation3 + $0x50] sm:$0xff]
    %v51 = vld [vmem:[#allocation3 + $0x58] sm:$0xff]
    %v52 = vld [vmem:[#allocation3 + $0x60] sm:$0xff]
    %v53 = vld [vmem:[#allocation3 + $0x68] sm:$0xff]
    %v54 = vld [vmem:[#allocation3 + $0x70] sm:$0xff]
    %v55 = vld [vmem:[#allocation3 + $0x78] sm:$0xff]
    %v56 = vld [vmem:[#allocation6] sm:$0xff]
    %v57 = vld [vmem:[#allocation6 + $0x8] sm:$0xff]
    %v58 = vld [vmem:[#allocation6 + $0x10] sm:$0xff]
    %v59 = vld [vmem:[#allocation6 + $0x18] sm:$0xff]
    %v60 = vld [vmem:[#allocation6 + $0x20] sm:$0xff]
    %v61 = vld [vmem:[#allocation6 + $0x28] sm:$0xff]
    %v62 = vld [vmem:[#allocation6 + $0x30] sm:$0xff]
    %v63 = vld [vmem:[#allocation6 + $0x38] sm:$0xff]
    %v64 = vld [vmem:[#allocation6 + $0x40] sm:$0xff]
    %v65 = vld [vmem:[#allocation6 + $0x48] sm:$0xff]
    %v66 = vld [vmem:[#allocation6 + $0x50] sm:$0xff]
    %v67 = vld [vmem:[#allocation6 + $0x58] sm:$0xff]
    %v68 = vld [vmem:[#allocation6 + $0x60] sm:$0xff]
    %v69 = vld [vmem:[#allocation6 + $0x68] sm:$0xff]
    %v70 = vld [vmem:[#allocation6 + $0x70] sm:$0xff]
    %v71 = vld [vmem:[#allocation6 + $0x78] sm:$0xff]
    %72 = vmatprep.subr.mxu0 0.0
    %73 = vmatpush1.msra.mxu0 %v71
    %74 = vmatprep.subr.mxu0 0.0
    %75 = vmatpush1.msra.mxu0 %v70
    %76 = vmatprep.subr.mxu0 0.0
    %77 = vmatpush1.msra.mxu0 %v69
    %78 = vmatprep.subr.mxu0 0.0
    %79 = vmatpush1.msra.mxu0 %v68
    %80 = vmatprep.subr.mxu0 0.0
    %81 = vmatpush1.msra.mxu0 %v67
    %82 = vmatprep.subr.mxu0 0.0
    %83 = vmatpush1.msra.mxu0 %v66
    %84 = vmatprep.subr.mxu0 0.0
    %85 = vmatpush1.msra.mxu0 %v65
    %86 = vmatprep.subr.mxu0 0.0
    %87 = vmatpush1.msra.mxu0 %v64
    %88 = vmatprep.subr.mxu0 0.0
    %89 = vmatpush1.msra.mxu0 %v63
    %90 = vmatprep.subr.mxu0 0.0
    %91 = vmatpush1.msra.mxu0 %v62
    %92 = vmatprep.subr.mxu0 0.0
    %93 = vmatpush1.msra.mxu0 %v61
    %94 = vmatprep.subr.mxu0 0.0
    %95 = vmatpush1.msra.mxu0 %v60
    %96 = vmatprep.subr.mxu0 0.0
    %97 = vmatpush1.msra.mxu0 %v59
    %98 = vmatprep.subr.mxu0 0.0
    %99 = vmatpush1.msra.mxu0 %v58
    %100 = vmatprep.subr.mxu0 0.0
    %101 = vmatpush1.msra.mxu0 %v57
    %102 = vmatprep.subr.mxu0 0.0
    %103 = vmatpush1.msra.mxu0 %v56
    %104 = vmatprep.subr.mxu0 0.0
    %105 = vmatpush2.msra.mxu0 0.0
    %106 = vmatprep.subr.mxu0 0.0
    %107 = vmatpush2.msra.mxu0 0.0
    %108 = vmatprep.subr.mxu0 0.0
    %109 = vmatpush2.msra.mxu0 0.0
    %110 = vmatprep.subr.mxu0 0.0
    %111 = vmatpush2.msra.mxu0 0.0
    %112 = vmatprep.subr.mxu0 0.0
    %113 = vmatpush2.msra.mxu0 0.0
    %114 = vmatprep.subr.mxu0 0.0
    %115 = vmatpush2.msra.mxu0 0.0
    %116 = vmatprep.subr.mxu0 0.0
    %117 = vmatpush2.msra.mxu0 0.0
    %118 = vmatprep.subr.mxu0 0.0
    %119 = vmatpush2.msra.mxu0 0.0
    %120 = vmatprep.subr.mxu0 0.0
    %121 = vmatpush2.msra.mxu0 0.0
    %122 = vmatprep.subr.mxu0 0.0
    %123 = vmatpush2.msra.mxu0 0.0
    %124 = vmatprep.subr.mxu0 0.0
    %125 = vmatpush2.msra.mxu0 0.0
    %126 = vmatprep.subr.mxu0 0.0
    %127 = vmatpush2.msra.mxu0 0.0
    %128 = vmatprep.subr.mxu0 0.0
    %129 = vmatpush2.msra.mxu0 0.0
    %130 = vmatprep.subr.mxu0 0.0
    %131 = vmatpush2.msra.mxu0 0.0
    %132 = vmatprep.subr.mxu0 0.0
    %133 = vmatpush2.msra.mxu0 0.0
    %134 = vmatprep.subr.mxu0 0.0
    %135 = vmatpush2.msra.mxu0 0.0
    %136 = vmatprep.mubr.f32.mxu0 0.0
    %137 = vmatmul.mubr.f32.gmra.mxu0 %v40
    %v138 = vpop.f32.mrf.mxu0
    %v139 = vadd.f32 0.0, %v138
    %v140 = vpop.f32.mrf.mxu0
    %141 = vmatprep.mubr.f32.mxu0 0.0
    %142 = vmatmul.mubr.f32.gmra.mxu0 %v41
    %v143 = vpop.f32.mrf.mxu0
    %v144 = vadd.f32 0.0, %v143
    %v145 = vpop.f32.mrf.mxu0
    %146 = vmatprep.mubr.f32.mxu0 0.0
    %147 = vmatmul.mubr.f32.gmra.mxu0 %v42
    %v148 = vpop.f32.mrf.mxu0
    %v149 = vadd.f32 0.0, %v148
    %v150 = vpop.f32.mrf.mxu0
    %151 = vmatprep.mubr.f32.mxu0 0.0
    %152 = vmatmul.mubr.f32.gmra.mxu0 %v43
    %v153 = vpop.f32.mrf.mxu0
    %v154 = vadd.f32 0.0, %v153
    %v155 = vpop.f32.mrf.mxu0
    %156 = vmatprep.mubr.f32.mxu0 0.0
    %157 = vmatmul.mubr.f32.gmra.mxu0 %v44
    %v158 = vpop.f32.mrf.mxu0
    %v159 = vadd.f32 0.0, %v158
    %v160 = vpop.f32.mrf.mxu0
    %161 = vmatprep.mubr.f32.mxu0 0.0
    %162 = vmatmul.mubr.f32.gmra.mxu0 %v45
    %v163 = vpop.f32.mrf.mxu0
    %v164 = vadd.f32 0.0, %v163
    %v165 = vpop.f32.mrf.mxu0
    %166 = vmatprep.mubr.f32.mxu0 0.0
    %167 = vmatmul.mubr.f32.gmra.mxu0 %v46
    %v168 = vpop.f32.mrf.mxu0
    %v169 = vadd.f32 0.0, %v168
    %v170 = vpop.f32.mrf.mxu0
    %171 = vmatprep.mubr.f32.mxu0 0.0
    %172 = vmatmul.mubr.f32.gmra.mxu0 %v47
    %v173 = vpop.f32.mrf.mxu0
    %v174 = vadd.f32 0.0, %v173
    %v175 = vpop.f32.mrf.mxu0
    %176 = vmatprep.mubr.f32.mxu0 0.0
    %177 = vmatmul.mubr.f32.gmra.mxu0 %v48
    %v178 = vpop.f32.mrf.mxu0
    %v179 = vadd.f32 0.0, %v178
    %v180 = vpop.f32.mrf.mxu0
    %181 = vmatprep.mubr.f32.mxu0 0.0
    %182 = vmatmul.mubr.f32.gmra.mxu0 %v49
    %v183 = vpop.f32.mrf.mxu0
    %v184 = vadd.f32 0.0, %v183
    %v185 = vpop.f32.mrf.mxu0
    %186 = vmatprep.mubr.f32.mxu0 0.0
    %187 = vmatmul.mubr.f32.gmra.mxu0 %v50
    %v188 = vpop.f32.mrf.mxu0
    %v189 = vadd.f32 0.0, %v188
    %v190 = vpop.f32.mrf.mxu0
    %191 = vmatprep.mubr.f32.mxu0 0.0
    %192 = vmatmul.mubr.f32.gmra.mxu0 %v51
    %v193 = vpop.f32.mrf.mxu0
    %v194 = vadd.f32 0.0, %v193
    %v195 = vpop.f32.mrf.mxu0
    %196 = vmatprep.mubr.f32.mxu0 0.0
    %197 = vmatmul.mubr.f32.gmra.mxu0 %v52
    %v198 = vpop.f32.mrf.mxu0
    %v199 = vadd.f32 0.0, %v198
    %v200 = vpop.f32.mrf.mxu0
    %201 = vmatprep.mubr.f32.mxu0 0.0
    %202 = vmatmul.mubr.f32.gmra.mxu0 %v53
    %v203 = vpop.f32.mrf.mxu0
    %v204 = vadd.f32 0.0, %v203
    %v205 = vpop.f32.mrf.mxu0
    %206 = vmatprep.mubr.f32.mxu0 0.0
    %207 = vmatmul.mubr.f32.gmra.mxu0 %v54
    %v208 = vpop.f32.mrf.mxu0
    %v209 = vadd.f32 0.0, %v208
    %v210 = vpop.f32.mrf.mxu0
    %211 = vmatprep.mubr.f32.mxu0 0.0
    %212 = vmatmul.mubr.f32.gmra.mxu0 %v55
    %v213 = vpop.f32.mrf.mxu0
    %v214 = vadd.f32 0.0, %v213
    %v215 = vpop.f32.mrf.mxu0
    %216 = vdwg.mxu0
    %217 = vst [vmem:[#allocation2] sm:$0xff] %v139
    %218 = vst [vmem:[#allocation2 + $0x8] sm:$0xff] %v144
    %219 = vst [vmem:[#allocation2 + $0x10] sm:$0xff] %v149
    %220 = vst [vmem:[#allocation2 + $0x18] sm:$0xff] %v154
    %221 = vst [vmem:[#allocation2 + $0x20] sm:$0xff] %v159
    %222 = vst [vmem:[#allocation2 + $0x28] sm:$0xff] %v164
    %223 = vst [vmem:[#allocation2 + $0x30] sm:$0xff] %v169
    %224 = vst [vmem:[#allocation2 + $0x38] sm:$0xff] %v174
    %225 = vst [vmem:[#allocation2 + $0x40] sm:$0xff] %v179
    %226 = vst [vmem:[#allocation2 + $0x48] sm:$0xff] %v184
    %227 = vst [vmem:[#allocation2 + $0x50] sm:$0xff] %v189
    %228 = vst [vmem:[#allocation2 + $0x58] sm:$0xff] %v194
    %229 = vst [vmem:[#allocation2 + $0x60] sm:$0xff] %v199
    %230 = vst [vmem:[#allocation2 + $0x68] sm:$0xff] %v204
    %231 = vst [vmem:[#allocation2 + $0x70] sm:$0xff] %v209
    %232 = vst [vmem:[#allocation2 + $0x78] sm:$0xff] %v214
    %v233 = vld [vmem:[#allocation6 + $0x80] sm:$0xff]
    %v234 = vld [vmem:[#allocation6 + $0x88] sm:$0xff]
    %v235 = vld [vmem:[#allocation6 + $0x90] sm:$0xff]
    %v236 = vld [vmem:[#allocation6 + $0x98] sm:$0xff]
    %v237 = vld [vmem:[#allocation6 + $0xc1] sm:$0x1]
    %v238 = vlaneseq
    %v239 = vshrl.u32 %v238, 7
    %v240 = vsub.s32 0, %v239
    %v241 = vrot.slane %v237, %v240
    %v242 = vld [vmem:[#allocation2] sm:$0xff]
    %v243 = vld [vmem:[#allocation2 + $0x8] sm:$0xff]
    %vm244 = vcmask 261120
    %v246 = vsel %vm244, 0.0, 0
    %248 = vmatprep.subr.mxu0 0.0
    %249 = vmatpush1.msra.mxu0 0.0
    %250 = vmatprep.subr.mxu0 0.0
    %251 = vmatpush1.msra.mxu0 0.0
    %252 = vmatprep.subr.mxu0 0.0
    %253 = vmatpush1.msra.mxu0 0.0
    %254 = vmatprep.subr.mxu0 0.0
    %255 = vmatpush1.msra.mxu0 0.0
    %256 = vmatprep.subr.mxu0 0.0
    %257 = vmatpush1.msra.mxu0 0.0
    %258 = vmatprep.subr.mxu0 0.0
    %259 = vmatpush1.msra.mxu0 0.0
    %260 = vmatprep.subr.mxu0 0.0
    %261 = vmatpush1.msra.mxu0 0.0
    %262 = vmatprep.subr.mxu0 0.0
    %263 = vmatpush1.msra.mxu0 0.0
    %264 = vmatprep.subr.mxu0 0.0
    %265 = vmatpush1.msra.mxu0 0.0
    %266 = vmatprep.subr.mxu0 0.0
    %267 = vmatpush1.msra.mxu0 0.0
    %268 = vmatprep.subr.mxu0 0.0
    %269 = vmatpush1.msra.mxu0 0.0
    %270 = vmatprep.subr.mxu0 0.0
    %271 = vmatpush1.msra.mxu0 0.0
    %272 = vmatprep.subr.mxu0 0.0
    %273 = vmatpush1.msra.mxu0 %v236
    %274 = vmatprep.subr.mxu0 0.0
    %275 = vmatpush1.msra.mxu0 %v235
    %276 = vmatprep.subr.mxu0 0.0
    %277 = vmatpush1.msra.mxu0 %v234
    %278 = vmatprep.subr.mxu0 0.0
    %279 = vmatpush1.msra.mxu0 %v233
    %280 = vmatprep.subr.mxu0 0.0
    %281 = vmatpush2.msra.mxu0 0.0
    %282 = vmatprep.subr.mxu0 0.0
    %283 = vmatpush2.msra.mxu0 0.0
    %284 = vmatprep.subr.mxu0 0.0
    %285 = vmatpush2.msra.mxu0 0.0
    %286 = vmatprep.subr.mxu0 0.0
    %287 = vmatpush2.msra.mxu0 0.0
    %288 = vmatprep.subr.mxu0 0.0
    %289 = vmatpush2.msra.mxu0 0.0
    %290 = vmatprep.subr.mxu0 0.0
    %291 = vmatpush2.msra.mxu0 0.0
    %292 = vmatprep.subr.mxu0 0.0
    %293 = vmatpush2.msra.mxu0 0.0
    %294 = vmatprep.subr.mxu0 0.0
    %295 = vmatpush2.msra.mxu0 0.0
    %296 = vmatprep.subr.mxu0 0.0
    %297 = vmatpush2.msra.mxu0 0.0
    %298 = vmatprep.subr.mxu0 0.0
    %299 = vmatpush2.msra.mxu0 0.0
    %300 = vmatprep.subr.mxu0 0.0
    %301 = vmatpush2.msra.mxu0 0.0
    %302 = vmatprep.subr.mxu0 0.0
    %303 = vmatpush2.msra.mxu0 0.0
    %304 = vmatprep.subr.mxu0 0.0
    %305 = vmatpush2.msra.mxu0 0.0
    %306 = vmatprep.subr.mxu0 0.0
    %307 = vmatpush2.msra.mxu0 0.0
    %308 = vmatprep.subr.mxu0 0.0
    %309 = vmatpush2.msra.mxu0 0.0
    %310 = vmatprep.subr.mxu0 0.0
    %311 = vmatpush2.msra.mxu0 0.0
    %312 = vmatprep.mubr.f32.mxu0 0.0
    %313 = vmatmul.mubr.f32.gmra.mxu0 %v246
    %v314 = vpop.f32.mrf.mxu0
    %v315 = vadd.f32 0.0, %v314
    %v316 = vpop.f32.mrf.mxu0
    %317 = vmatprep.mubr.f32.mxu0 0.0
    %318 = vmatmul.mubr.f32.gmra.mxu0 %v246
    %v319 = vpop.f32.mrf.mxu0
    %v320 = vadd.f32 0.0, %v319
    %v321 = vpop.f32.mrf.mxu0
    %322 = vdwg.mxu0
    %v323 = vadd.f32 %v242, %v315
    %v324 = vadd.f32 %v243, %v320
    %v325 = vxor.u32 %v323, 2147483648
    %v326 = vxor.u32 %v324, 2147483648
    %v327 = vmul.f32 %v325, 1.442695
    %v328 = vpow.pop %v327
    %v329 = vmul.f32 %v326, 1.442695
    %v330 = vpow.pop %v329
    %v331 = vadd.f32 %v328, 1.0
    %v332 = vadd.f32 %v330, 1.0
    %v333 = vrcp.pop %v331
    %v334 = vmul.f32 1.0, %v333
    %v335 = vrcp.pop %v332
    %v336 = vmul.f32 1.0, %v335
    %338 = vrot.lane.b32.xlu0 %v241, 64
    %v339 = vpop.permute.xlu0 %338
    %v341 = vadd.f32 %v315, %v339
    %v342 = vadd.f32 %v320, %v339
    %345 = vrot.lane.b32.xlu0 %v341, 64
    %v346 = vpop.permute.xlu0 %345
    %347 = vrot.lane.b32.xlu0 %v342, 64
    %v348 = vpop.permute.xlu0 %347
    %v351 = vmul.f32 %v334, %v346
    %v352 = vmul.f32 %v336, %v348
    %355 = vrot.lane.b32.xlu0 %v351, 64
    %v356 = vpop.permute.xlu0 %355
    %357 = vrot.lane.b32.xlu0 %v352, 64
    %v358 = vpop.permute.xlu0 %357
    %v361 = vadd.f32 %v242, %v356
    %v362 = vadd.f32 %v243, %v358
    %v363 = vtanh.pop %v361
    %v364 = vtanh.pop %v362
    %v365 = vsub.f32 1.0, %v334
    %v366 = vsub.f32 1.0, %v336
    %369 = vrot.lane.b32.xlu0 %v363, 96
    %v370 = vpop.permute.xlu0 %369
    %371 = vrot.lane.b32.xlu0 %v364, 96
    %v372 = vpop.permute.xlu0 %371
    %v375 = vmul.f32 %v365, %v370
    %v376 = vmul.f32 %v366, %v372
    %v377 = vmul.f32 %v334, 0.0
    %v378 = vmul.f32 %v336, 0.0
    %v379 = vadd.f32 %v375, %v377
    %v380 = vadd.f32 %v376, %v378
    %v381 = vld [vmem:[#allocation3] sm:$0xff]
    %v382 = vld [vmem:[#allocation3 + $0x8] sm:$0xff]
    %385 = vrot.lane.b32.xlu0 %v379, 64
    %v386 = vpop.permute.xlu0 %385
    %387 = vrot.lane.b32.xlu0 %v380, 64
    %v388 = vpop.permute.xlu0 %387
    %v391 = vmul.f32 %v381, %v386
    %v392 = vmul.f32 %v382, %v388
    %v393 = vadd.f32 %v391, 0.0
    %v394 = vadd.f32 %v392, 0.0
    %s395 = scalar_lea.vmem [#allocation2], 16
    %v396 = vld [vmem:[%s395] sm:$0xff]
    %v397 = vld [vmem:[%s395 + $0x8] sm:$0xff]
    %398 = vrot.lane.b32.xlu0 %v379, 96
    %v399 = vpop.permute.xlu0 %398
    %400 = vrot.lane.b32.xlu0 %v380, 96
    %v401 = vpop.permute.xlu0 %400
    %v402 = vsel %vm244, %v399, 0
    %v404 = vsel %vm244, %v401, 0
    %406 = vmatprep.subr.mxu0 0.0
    %407 = vmatpush1.msra.mxu0 0.0
    %408 = vmatprep.subr.mxu0 0.0
    %409 = vmatpush1.msra.mxu0 0.0
    %410 = vmatprep.subr.mxu0 0.0
    %411 = vmatpush1.msra.mxu0 0.0
    %412 = vmatprep.subr.mxu0 0.0
    %413 = vmatpush1.msra.mxu0 0.0
    %414 = vmatprep.subr.mxu0 0.0
    %415 = vmatpush1.msra.mxu0 0.0
    %416 = vmatprep.subr.mxu0 0.0
    %417 = vmatpush1.msra.mxu0 0.0
    %418 = vmatprep.subr.mxu0 0.0
    %419 = vmatpush1.msra.mxu0 0.0
    %420 = vmatprep.subr.mxu0 0.0
    %421 = vmatpush1.msra.mxu0 0.0
    %422 = vmatprep.subr.mxu0 0.0
    %423 = vmatpush1.msra.mxu0 0.0
    %424 = vmatprep.subr.mxu0 0.0
    %425 = vmatpush1.msra.mxu0 0.0
    %426 = vmatprep.subr.mxu0 0.0
    %427 = vmatpush1.msra.mxu0 0.0
    %428 = vmatprep.subr.mxu0 0.0
    %429 = vmatpush1.msra.mxu0 0.0
    %430 = vmatprep.subr.mxu0 0.0
    %431 = vmatpush1.msra.mxu0 %v236
    %432 = vmatprep.subr.mxu0 0.0
    %433 = vmatpush1.msra.mxu0 %v235
    %434 = vmatprep.subr.mxu0 0.0
    %435 = vmatpush1.msra.mxu0 %v234
    %436 = vmatprep.subr.mxu0 0.0
    %437 = vmatpush1.msra.mxu0 %v233
    %438 = vmatprep.subr.mxu0 0.0
    %439 = vmatpush2.msra.mxu0 0.0
    %440 = vmatprep.subr.mxu0 0.0
    %441 = vmatpush2.msra.mxu0 0.0
    %442 = vmatprep.subr.mxu0 0.0
    %443 = vmatpush2.msra.mxu0 0.0
    %444 = vmatprep.subr.mxu0 0.0
    %445 = vmatpush2.msra.mxu0 0.0
    %446 = vmatprep.subr.mxu0 0.0
    %447 = vmatpush2.msra.mxu0 0.0
    %448 = vmatprep.subr.mxu0 0.0
    %449 = vmatpush2.msra.mxu0 0.0
    %450 = vmatprep.subr.mxu0 0.0
    %451 = vmatpush2.msra.mxu0 0.0
    %452 = vmatprep.subr.mxu0 0.0
    %453 = vmatpush2.msra.mxu0 0.0
    %454 = vmatprep.subr.mxu0 0.0
    %455 = vmatpush2.msra.mxu0 0.0
    %456 = vmatprep.subr.mxu0 0.0
    %457 = vmatpush2.msra.mxu0 0.0
    %458 = vmatprep.subr.mxu0 0.0
    %459 = vmatpush2.msra.mxu0 0.0
    %460 = vmatprep.subr.mxu0 0.0
    %461 = vmatpush2.msra.mxu0 0.0
    %462 = vmatprep.subr.mxu0 0.0
    %463 = vmatpush2.msra.mxu0 0.0
    %464 = vmatprep.subr.mxu0 0.0
    %465 = vmatpush2.msra.mxu0 0.0
    %466 = vmatprep.subr.mxu0 0.0
    %467 = vmatpush2.msra.mxu0 0.0
    %468 = vmatprep.subr.mxu0 0.0
    %469 = vmatpush2.msra.mxu0 0.0
    %470 = vmatprep.mubr.f32.mxu0 0.0
    %471 = vmatmul.mubr.f32.gmra.mxu0 %v402
    %v472 = vpop.f32.mrf.mxu0
    %v473 = vadd.f32 0.0, %v472
    %v474 = vpop.f32.mrf.mxu0
    %475 = vmatprep.mubr.f32.mxu0 0.0
    %476 = vmatmul.mubr.f32.gmra.mxu0 %v404
    %v477 = vpop.f32.mrf.mxu0
    %v478 = vadd.f32 0.0, %v477
    %v479 = vpop.f32.mrf.mxu0
    %480 = vdwg.mxu0
    %v481 = vadd.f32 %v396, %v473
    %v482 = vadd.f32 %v397, %v478
    %v483 = vxor.u32 %v481, 2147483648
    %v484 = vxor.u32 %v482, 2147483648
    %v485 = vmul.f32 %v483, 1.442695
    %v486 = vpow.pop %v485
    %v487 = vmul.f32 %v484, 1.442695
    %v488 = vpow.pop %v487
    %v489 = vadd.f32 %v486, 1.0
    %v490 = vadd.f32 %v488, 1.0
    %v491 = vrcp.pop %v489
    %v492 = vmul.f32 1.0, %v491
    %v493 = vrcp.pop %v490
    %v494 = vmul.f32 1.0, %v493
    %v495 = vadd.f32 %v473, %v339
    %v496 = vadd.f32 %v478, %v339
    %499 = vrot.lane.b32.xlu0 %v495, 64
    %v500 = vpop.permute.xlu0 %499
    %501 = vrot.lane.b32.xlu0 %v496, 64
    %v502 = vpop.permute.xlu0 %501
    %v505 = vmul.f32 %v492, %v500
    %v506 = vmul.f32 %v494, %v502
    %509 = vrot.lane.b32.xlu0 %v505, 64
    %v510 = vpop.permute.xlu0 %509
    %511 = vrot.lane.b32.xlu0 %v506, 64
    %v512 = vpop.permute.xlu0 %511
    %v515 = vadd.f32 %v396, %v510
    %v516 = vadd.f32 %v397, %v512
    %v517 = vtanh.pop %v515
    %v518 = vtanh.pop %v516
    %v519 = vsub.f32 1.0, %v492
    %v520 = vsub.f32 1.0, %v494
    %523 = vrot.lane.b32.xlu0 %v517, 96
    %v524 = vpop.permute.xlu0 %523
    %525 = vrot.lane.b32.xlu0 %v518, 96
    %v526 = vpop.permute.xlu0 %525
    %v529 = vmul.f32 %v519, %v524
    %v530 = vmul.f32 %v520, %v526
    %v531 = vmul.f32 %v492, %v379
    %v532 = vmul.f32 %v494, %v380
    %v533 = vadd.f32 %v529, %v531
    %v534 = vadd.f32 %v530, %v532
    %s535 = scalar_lea.vmem [#allocation3], 16
    %v536 = vld [vmem:[%s535] sm:$0xff]
    %v537 = vld [vmem:[%s535 + $0x8] sm:$0xff]
    %540 = vrot.lane.b32.xlu0 %v533, 64
    %v541 = vpop.permute.xlu0 %540
    %542 = vrot.lane.b32.xlu0 %v534, 64
    %v543 = vpop.permute.xlu0 %542
    %v546 = vmul.f32 %v536, %v541
    %v547 = vmul.f32 %v537, %v543
    %v548 = vadd.f32 %v393, %v546
    %v549 = vadd.f32 %v394, %v547
    %s550 = scalar_lea.vmem [#allocation2], 32
    %v551 = vld [vmem:[%s550] sm:$0xff]
    %v552 = vld [vmem:[%s550 + $0x8] sm:$0xff]
    %553 = vrot.lane.b32.xlu0 %v533, 96
    %v554 = vpop.permute.xlu0 %553
    %555 = vrot.lane.b32.xlu0 %v534, 96
    %v556 = vpop.permute.xlu0 %555
    %v557 = vsel %vm244, %v554, 0
    %v559 = vsel %vm244, %v556, 0
    %561 = vmatprep.subr.mxu0 0.0
    %562 = vmatpush1.msra.mxu0 0.0
    %563 = vmatprep.subr.mxu0 0.0
    %564 = vmatpush1.msra.mxu0 0.0
    %565 = vmatprep.subr.mxu0 0.0
    %566 = vmatpush1.msra.mxu0 0.0
    %567 = vmatprep.subr.mxu0 0.0
    %568 = vmatpush1.msra.mxu0 0.0
    %569 = vmatprep.subr.mxu0 0.0
    %570 = vmatpush1.msra.mxu0 0.0
    %571 = vmatprep.subr.mxu0 0.0
    %572 = vmatpush1.msra.mxu0 0.0
    %573 = vmatprep.subr.mxu0 0.0
    %574 = vmatpush1.msra.mxu0 0.0
    %575 = vmatprep.subr.mxu0 0.0
    %576 = vmatpush1.msra.mxu0 0.0
    %577 = vmatprep.subr.mxu0 0.0
    %578 = vmatpush1.msra.mxu0 0.0
    %579 = vmatprep.subr.mxu0 0.0
    %580 = vmatpush1.msra.mxu0 0.0
    %581 = vmatprep.subr.mxu0 0.0
    %582 = vmatpush1.msra.mxu0 0.0
    %583 = vmatprep.subr.mxu0 0.0
    %584 = vmatpush1.msra.mxu0 0.0
    %585 = vmatprep.subr.mxu0 0.0
    %586 = vmatpush1.msra.mxu0 %v236
    %587 = vmatprep.subr.mxu0 0.0
    %588 = vmatpush1.msra.mxu0 %v235
    %589 = vmatprep.subr.mxu0 0.0
    %590 = vmatpush1.msra.mxu0 %v234
    %591 = vmatprep.subr.mxu0 0.0
    %592 = vmatpush1.msra.mxu0 %v233
    %593 = vmatprep.subr.mxu0 0.0
    %594 = vmatpush2.msra.mxu0 0.0
    %595 = vmatprep.subr.mxu0 0.0
    %596 = vmatpush2.msra.mxu0 0.0
    %597 = vmatprep.subr.mxu0 0.0
    %598 = vmatpush2.msra.mxu0 0.0
    %599 = vmatprep.subr.mxu0 0.0
    %600 = vmatpush2.msra.mxu0 0.0
    %601 = vmatprep.subr.mxu0 0.0
    %602 = vmatpush2.msra.mxu0 0.0
    %603 = vmatprep.subr.mxu0 0.0
    %604 = vmatpush2.msra.mxu0 0.0
    %605 = vmatprep.subr.mxu0 0.0
    %606 = vmatpush2.msra.mxu0 0.0
    %607 = vmatprep.subr.mxu0 0.0
    %608 = vmatpush2.msra.mxu0 0.0
    %609 = vmatprep.subr.mxu0 0.0
    %610 = vmatpush2.msra.mxu0 0.0
    %611 = vmatprep.subr.mxu0 0.0
    %612 = vmatpush2.msra.mxu0 0.0
    %613 = vmatprep.subr.mxu0 0.0
    %614 = vmatpush2.msra.mxu0 0.0
    %615 = vmatprep.subr.mxu0 0.0
    %616 = vmatpush2.msra.mxu0 0.0
    %617 = vmatprep.subr.mxu0 0.0
    %618 = vmatpush2.msra.mxu0 0.0
    %619 = vmatprep.subr.mxu0 0.0
    %620 = vmatpush2.msra.mxu0 0.0
    %621 = vmatprep.subr.mxu0 0.0
    %622 = vmatpush2.msra.mxu0 0.0
    %623 = vmatprep.subr.mxu0 0.0
    %624 = vmatpush2.msra.mxu0 0.0
    %625 = vmatprep.mubr.f32.mxu0 0.0
    %626 = vmatmul.mubr.f32.gmra.mxu0 %v557
    %v627 = vpop.f32.mrf.mxu0
    %v628 = vadd.f32 0.0, %v627
    %v629 = vpop.f32.mrf.mxu0
    %630 = vmatprep.mubr.f32.mxu0 0.0
    %631 = vmatmul.mubr.f32.gmra.mxu0 %v559
    %v632 = vpop.f32.mrf.mxu0
    %v633 = vadd.f32 0.0, %v632
    %v634 = vpop.f32.mrf.mxu0
    %635 = vdwg.mxu0
    %v636 = vadd.f32 %v551, %v628
    %v637 = vadd.f32 %v552, %v633
    %v638 = vxor.u32 %v636, 2147483648
    %v639 = vxor.u32 %v637, 2147483648
    %v640 = vmul.f32 %v638, 1.442695
    %v641 = vpow.pop %v640
    %v642 = vmul.f32 %v639, 1.442695
    %v643 = vpow.pop %v642
    %v644 = vadd.f32 %v641, 1.0
    %v645 = vadd.f32 %v643, 1.0
    %v646 = vrcp.pop %v644
    %v647 = vmul.f32 1.0, %v646
    %v648 = vrcp.pop %v645
    %v649 = vmul.f32 1.0, %v648
    %v650 = vadd.f32 %v628, %v339
    %v651 = vadd.f32 %v633, %v339
    %654 = vrot.lane.b32.xlu0 %v650, 64
    %v655 = vpop.permute.xlu0 %654
    %656 = vrot.lane.b32.xlu0 %v651, 64
    %v657 = vpop.permute.xlu0 %656
    %v660 = vmul.f32 %v647, %v655
    %v661 = vmul.f32 %v649, %v657
    %664 = vrot.lane.b32.xlu0 %v660, 64
    %v665 = vpop.permute.xlu0 %664
    %666 = vrot.lane.b32.xlu0 %v661, 64
    %v667 = vpop.permute.xlu0 %666
    %v670 = vadd.f32 %v551, %v665
    %v671 = vadd.f32 %v552, %v667
    %v672 = vtanh.pop %v670
    %v673 = vtanh.pop %v671
    %v674 = vsub.f32 1.0, %v647
    %v675 = vsub.f32 1.0, %v649
    %678 = vrot.lane.b32.xlu0 %v672, 96
    %v679 = vpop.permute.xlu0 %678
    %680 = vrot.lane.b32.xlu0 %v673, 96
    %v681 = vpop.permute.xlu0 %680
    %v684 = vmul.f32 %v674, %v679
    %v685 = vmul.f32 %v675, %v681
    %v686 = vmul.f32 %v647, %v533
    %v687 = vmul.f32 %v649, %v534
    %v688 = vadd.f32 %v684, %v686
    %v689 = vadd.f32 %v685, %v687
    %s690 = scalar_lea.vmem [#allocation3], 32
    %v691 = vld [vmem:[%s690] sm:$0xff]
    %v692 = vld [vmem:[%s690 + $0x8] sm:$0xff]
    %695 = vrot.lane.b32.xlu0 %v688, 64
    %v696 = vpop.permute.xlu0 %695
    %697 = vrot.lane.b32.xlu0 %v689, 64
    %v698 = vpop.permute.xlu0 %697
    %v701 = vmul.f32 %v691, %v696
    %v702 = vmul.f32 %v692, %v698
    %v703 = vadd.f32 %v548, %v701
    %v704 = vadd.f32 %v549, %v702
    %s705 = scalar_lea.vmem [#allocation2], 48
    %v706 = vld [vmem:[%s705] sm:$0xff]
    %v707 = vld [vmem:[%s705 + $0x8] sm:$0xff]
    %708 = vrot.lane.b32.xlu0 %v688, 96
    %v709 = vpop.permute.xlu0 %708
    %710 = vrot.lane.b32.xlu0 %v689, 96
    %v711 = vpop.permute.xlu0 %710
    %v712 = vsel %vm244, %v709, 0
    %v714 = vsel %vm244, %v711, 0
    %716 = vmatprep.subr.mxu0 0.0
    %717 = vmatpush1.msra.mxu0 0.0
    %718 = vmatprep.subr.mxu0 0.0
    %719 = vmatpush1.msra.mxu0 0.0
    %720 = vmatprep.subr.mxu0 0.0
    %721 = vmatpush1.msra.mxu0 0.0
    %722 = vmatprep.subr.mxu0 0.0
    %723 = vmatpush1.msra.mxu0 0.0
    %724 = vmatprep.subr.mxu0 0.0
    %725 = vmatpush1.msra.mxu0 0.0
    %726 = vmatprep.subr.mxu0 0.0
    %727 = vmatpush1.msra.mxu0 0.0
    %728 = vmatprep.subr.mxu0 0.0
    %729 = vmatpush1.msra.mxu0 0.0
    %730 = vmatprep.subr.mxu0 0.0
    %731 = vmatpush1.msra.mxu0 0.0
    %732 = vmatprep.subr.mxu0 0.0
    %733 = vmatpush1.msra.mxu0 0.0
    %734 = vmatprep.subr.mxu0 0.0
    %735 = vmatpush1.msra.mxu0 0.0
    %736 = vmatprep.subr.mxu0 0.0
    %737 = vmatpush1.msra.mxu0 0.0
    %738 = vmatprep.subr.mxu0 0.0
    %739 = vmatpush1.msra.mxu0 0.0
    %740 = vmatprep.subr.mxu0 0.0
    %741 = vmatpush1.msra.mxu0 %v236
    %742 = vmatprep.subr.mxu0 0.0
    %743 = vmatpush1.msra.mxu0 %v235
    %744 = vmatprep.subr.mxu0 0.0
    %745 = vmatpush1.msra.mxu0 %v234
    %746 = vmatprep.subr.mxu0 0.0
    %747 = vmatpush1.msra.mxu0 %v233
    %748 = vmatprep.subr.mxu0 0.0
    %749 = vmatpush2.msra.mxu0 0.0
    %750 = vmatprep.subr.mxu0 0.0
    %751 = vmatpush2.msra.mxu0 0.0
    %752 = vmatprep.subr.mxu0 0.0
    %753 = vmatpush2.msra.mxu0 0.0
    %754 = vmatprep.subr.mxu0 0.0
    %755 = vmatpush2.msra.mxu0 0.0
    %756 = vmatprep.subr.mxu0 0.0
    %757 = vmatpush2.msra.mxu0 0.0
    %758 = vmatprep.subr.mxu0 0.0
    %759 = vmatpush2.msra.mxu0 0.0
    %760 = vmatprep.subr.mxu0 0.0
    %761 = vmatpush2.msra.mxu0 0.0
    %762 = vmatprep.subr.mxu0 0.0
    %763 = vmatpush2.msra.mxu0 0.0
    %764 = vmatprep.subr.mxu0 0.0
    %765 = vmatpush2.msra.mxu0 0.0
    %766 = vmatprep.subr.mxu0 0.0
    %767 = vmatpush2.msra.mxu0 0.0
    %768 = vmatprep.subr.mxu0 0.0
    %769 = vmatpush2.msra.mxu0 0.0
    %770 = vmatprep.subr.mxu0 0.0
    %771 = vmatpush2.msra.mxu0 0.0
    %772 = vmatprep.subr.mxu0 0.0
    %773 = vmatpush2.msra.mxu0 0.0
    %774 = vmatprep.subr.mxu0 0.0
    %775 = vmatpush2.msra.mxu0 0.0
    %776 = vmatprep.subr.mxu0 0.0
    %777 = vmatpush2.msra.mxu0 0.0
    %778 = vmatprep.subr.mxu0 0.0
    %779 = vmatpush2.msra.mxu0 0.0
    %780 = vmatprep.mubr.f32.mxu0 0.0
    %781 = vmatmul.mubr.f32.gmra.mxu0 %v712
    %v782 = vpop.f32.mrf.mxu0
    %v783 = vadd.f32 0.0, %v782
    %v784 = vpop.f32.mrf.mxu0
    %785 = vmatprep.mubr.f32.mxu0 0.0
    %786 = vmatmul.mubr.f32.gmra.mxu0 %v714
    %v787 = vpop.f32.mrf.mxu0
    %v788 = vadd.f32 0.0, %v787
    %v789 = vpop.f32.mrf.mxu0
    %790 = vdwg.mxu0
    %v791 = vadd.f32 %v706, %v783
    %v792 = vadd.f32 %v707, %v788
    %v793 = vxor.u32 %v791, 2147483648
    %v794 = vxor.u32 %v792, 2147483648
    %v795 = vmul.f32 %v793, 1.442695
    %v796 = vpow.pop %v795
    %v797 = vmul.f32 %v794, 1.442695
    %v798 = vpow.pop %v797
    %v799 = vadd.f32 %v796, 1.0
    %v800 = vadd.f32 %v798, 1.0
    %v801 = vrcp.pop %v799
    %v802 = vmul.f32 1.0, %v801
    %v803 = vrcp.pop %v800
    %v804 = vmul.f32 1.0, %v803
    %v805 = vadd.f32 %v783, %v339
    %v806 = vadd.f32 %v788, %v339
    %809 = vrot.lane.b32.xlu0 %v805, 64
    %v810 = vpop.permute.xlu0 %809
    %811 = vrot.lane.b32.xlu0 %v806, 64
    %v812 = vpop.permute.xlu0 %811
    %v815 = vmul.f32 %v802, %v810
    %v816 = vmul.f32 %v804, %v812
    %819 = vrot.lane.b32.xlu0 %v815, 64
    %v820 = vpop.permute.xlu0 %819
    %821 = vrot.lane.b32.xlu0 %v816, 64
    %v822 = vpop.permute.xlu0 %821
    %v825 = vadd.f32 %v706, %v820
    %v826 = vadd.f32 %v707, %v822
    %v827 = vtanh.pop %v825
    %v828 = vtanh.pop %v826
    %v829 = vsub.f32 1.0, %v802
    %v830 = vsub.f32 1.0, %v804
    %833 = vrot.lane.b32.xlu0 %v827, 96
    %v834 = vpop.permute.xlu0 %833
    %835 = vrot.lane.b32.xlu0 %v828, 96
    %v836 = vpop.permute.xlu0 %835
    %v839 = vmul.f32 %v829, %v834
    %v840 = vmul.f32 %v830, %v836
    %v841 = vmul.f32 %v802, %v688
    %v842 = vmul.f32 %v804, %v689
    %v843 = vadd.f32 %v839, %v841
    %v844 = vadd.f32 %v840, %v842
    %s845 = scalar_lea.vmem [#allocation3], 48
    %v846 = vld [vmem:[%s845] sm:$0xff]
    %v847 = vld [vmem:[%s845 + $0x8] sm:$0xff]
    %850 = vrot.lane.b32.xlu0 %v843, 64
    %v851 = vpop.permute.xlu0 %850
    %852 = vrot.lane.b32.xlu0 %v844, 64
    %v853 = vpop.permute.xlu0 %852
    %v856 = vmul.f32 %v846, %v851
    %v857 = vmul.f32 %v847, %v853
    %v858 = vadd.f32 %v703, %v856
    %v859 = vadd.f32 %v704, %v857
    %s860 = scalar_lea.vmem [#allocation2], 64
    %v861 = vld [vmem:[%s860] sm:$0xff]
    %v862 = vld [vmem:[%s860 + $0x8] sm:$0xff]
    %863 = vrot.lane.b32.xlu0 %v843, 96
    %v864 = vpop.permute.xlu0 %863
    %865 = vrot.lane.b32.xlu0 %v844, 96
    %v866 = vpop.permute.xlu0 %865
    %v867 = vsel %vm244, %v864, 0
    %v869 = vsel %vm244, %v866, 0
    %871 = vmatprep.subr.mxu0 0.0
    %872 = vmatpush1.msra.mxu0 0.0
    %873 = vmatprep.subr.mxu0 0.0
    %874 = vmatpush1.msra.mxu0 0.0
    %875 = vmatprep.subr.mxu0 0.0
    %876 = vmatpush1.msra.mxu0 0.0
    %877 = vmatprep.subr.mxu0 0.0
    %878 = vmatpush1.msra.mxu0 0.0
    %879 = vmatprep.subr.mxu0 0.0
    %880 = vmatpush1.msra.mxu0 0.0
    %881 = vmatprep.subr.mxu0 0.0
    %882 = vmatpush1.msra.mxu0 0.0
    %883 = vmatprep.subr.mxu0 0.0
    %884 = vmatpush1.msra.mxu0 0.0
    %885 = vmatprep.subr.mxu0 0.0
    %886 = vmatpush1.msra.mxu0 0.0
    %887 = vmatprep.subr.mxu0 0.0
    %888 = vmatpush1.msra.mxu0 0.0
    %889 = vmatprep.subr.mxu0 0.0
    %890 = vmatpush1.msra.mxu0 0.0
    %891 = vmatprep.subr.mxu0 0.0
    %892 = vmatpush1.msra.mxu0 0.0
    %893 = vmatprep.subr.mxu0 0.0
    %894 = vmatpush1.msra.mxu0 0.0
    %895 = vmatprep.subr.mxu0 0.0
    %896 = vmatpush1.msra.mxu0 %v236
    %897 = vmatprep.subr.mxu0 0.0
    %898 = vmatpush1.msra.mxu0 %v235
    %899 = vmatprep.subr.mxu0 0.0
    %900 = vmatpush1.msra.mxu0 %v234
    %901 = vmatprep.subr.mxu0 0.0
    %902 = vmatpush1.msra.mxu0 %v233
    %903 = vmatprep.subr.mxu0 0.0
    %904 = vmatpush2.msra.mxu0 0.0
    %905 = vmatprep.subr.mxu0 0.0
    %906 = vmatpush2.msra.mxu0 0.0
    %907 = vmatprep.subr.mxu0 0.0
    %908 = vmatpush2.msra.mxu0 0.0
    %909 = vmatprep.subr.mxu0 0.0
    %910 = vmatpush2.msra.mxu0 0.0
    %911 = vmatprep.subr.mxu0 0.0
    %912 = vmatpush2.msra.mxu0 0.0
    %913 = vmatprep.subr.mxu0 0.0
    %914 = vmatpush2.msra.mxu0 0.0
    %915 = vmatprep.subr.mxu0 0.0
    %916 = vmatpush2.msra.mxu0 0.0
    %917 = vmatprep.subr.mxu0 0.0
    %918 = vmatpush2.msra.mxu0 0.0
    %919 = vmatprep.subr.mxu0 0.0
    %920 = vmatpush2.msra.mxu0 0.0
    %921 = vmatprep.subr.mxu0 0.0
    %922 = vmatpush2.msra.mxu0 0.0
    %923 = vmatprep.subr.mxu0 0.0
    %924 = vmatpush2.msra.mxu0 0.0
    %925 = vmatprep.subr.mxu0 0.0
    %926 = vmatpush2.msra.mxu0 0.0
    %927 = vmatprep.subr.mxu0 0.0
    %928 = vmatpush2.msra.mxu0 0.0
    %929 = vmatprep.subr.mxu0 0.0
    %930 = vmatpush2.msra.mxu0 0.0
    %931 = vmatprep.subr.mxu0 0.0
    %932 = vmatpush2.msra.mxu0 0.0
    %933 = vmatprep.subr.mxu0 0.0
    %934 = vmatpush2.msra.mxu0 0.0
    %935 = vmatprep.mubr.f32.mxu0 0.0
    %936 = vmatmul.mubr.f32.gmra.mxu0 %v867
    %v937 = vpop.f32.mrf.mxu0
    %v938 = vadd.f32 0.0, %v937
    %v939 = vpop.f32.mrf.mxu0
    %940 = vmatprep.mubr.f32.mxu0 0.0
    %941 = vmatmul.mubr.f32.gmra.mxu0 %v869
    %v942 = vpop.f32.mrf.mxu0
    %v943 = vadd.f32 0.0, %v942
    %v944 = vpop.f32.mrf.mxu0
    %945 = vdwg.mxu0
    %v946 = vadd.f32 %v861, %v938
    %v947 = vadd.f32 %v862, %v943
    %v948 = vxor.u32 %v946, 2147483648
    %v949 = vxor.u32 %v947, 2147483648
    %v950 = vmul.f32 %v948, 1.442695
    %v951 = vpow.pop %v950
    %v952 = vmul.f32 %v949, 1.442695
    %v953 = vpow.pop %v952
    %v954 = vadd.f32 %v951, 1.0
    %v955 = vadd.f32 %v953, 1.0
    %v956 = vrcp.pop %v954
    %v957 = vmul.f32 1.0, %v956
    %v958 = vrcp.pop %v955
    %v959 = vmul.f32 1.0, %v958
    %v960 = vadd.f32 %v938, %v339
    %v961 = vadd.f32 %v943, %v339
    %964 = vrot.lane.b32.xlu0 %v960, 64
    %v965 = vpop.permute.xlu0 %964
    %966 = vrot.lane.b32.xlu0 %v961, 64
    %v967 = vpop.permute.xlu0 %966
    %v970 = vmul.f32 %v957, %v965
    %v971 = vmul.f32 %v959, %v967
    %974 = vrot.lane.b32.xlu0 %v970, 64
    %v975 = vpop.permute.xlu0 %974
    %976 = vrot.lane.b32.xlu0 %v971, 64
    %v977 = vpop.permute.xlu0 %976
    %v980 = vadd.f32 %v861, %v975
    %v981 = vadd.f32 %v862, %v977
    %v982 = vtanh.pop %v980
    %v983 = vtanh.pop %v981
    %v984 = vsub.f32 1.0, %v957
    %v985 = vsub.f32 1.0, %v959
    %988 = vrot.lane.b32.xlu0 %v982, 96
    %v989 = vpop.permute.xlu0 %988
    %990 = vrot.lane.b32.xlu0 %v983, 96
    %v991 = vpop.permute.xlu0 %990
    %v994 = vmul.f32 %v984, %v989
    %v995 = vmul.f32 %v985, %v991
    %v996 = vmul.f32 %v957, %v843
    %v997 = vmul.f32 %v959, %v844
    %v998 = vadd.f32 %v994, %v996
    %v999 = vadd.f32 %v995, %v997
    %s1000 = scalar_lea.vmem [#allocation3], 64
    %v1001 = vld [vmem:[%s1000] sm:$0xff]
    %v1002 = vld [vmem:[%s1000 + $0x8] sm:$0xff]
    %1005 = vrot.lane.b32.xlu0 %v998, 64
    %v1006 = vpop.permute.xlu0 %1005
    %1007 = vrot.lane.b32.xlu0 %v999, 64
    %v1008 = vpop.permute.xlu0 %1007
    %v1011 = vmul.f32 %v1001, %v1006
    %v1012 = vmul.f32 %v1002, %v1008
    %v1013 = vadd.f32 %v858, %v1011
    %v1014 = vadd.f32 %v859, %v1012
    %s1015 = scalar_lea.vmem [#allocation2], 80
    %v1016 = vld [vmem:[%s1015] sm:$0xff]
    %v1017 = vld [vmem:[%s1015 + $0x8] sm:$0xff]
    %1018 = vrot.lane.b32.xlu0 %v998, 96
    %v1019 = vpop.permute.xlu0 %1018
    %1020 = vrot.lane.b32.xlu0 %v999, 96
    %v1021 = vpop.permute.xlu0 %1020
    %v1022 = vsel %vm244, %v1019, 0
    %v1024 = vsel %vm244, %v1021, 0
    %1026 = vmatprep.subr.mxu0 0.0
    %1027 = vmatpush1.msra.mxu0 0.0
    %1028 = vmatprep.subr.mxu0 0.0
    %1029 = vmatpush1.msra.mxu0 0.0
    %1030 = vmatprep.subr.mxu0 0.0
    %1031 = vmatpush1.msra.mxu0 0.0
    %1032 = vmatprep.subr.mxu0 0.0
    %1033 = vmatpush1.msra.mxu0 0.0
    %1034 = vmatprep.subr.mxu0 0.0
    %1035 = vmatpush1.msra.mxu0 0.0
    %1036 = vmatprep.subr.mxu0 0.0
    %1037 = vmatpush1.msra.mxu0 0.0
    %1038 = vmatprep.subr.mxu0 0.0
    %1039 = vmatpush1.msra.mxu0 0.0
    %1040 = vmatprep.subr.mxu0 0.0
    %1041 = vmatpush1.msra.mxu0 0.0
    %1042 = vmatprep.subr.mxu0 0.0
    %1043 = vmatpush1.msra.mxu0 0.0
    %1044 = vmatprep.subr.mxu0 0.0
    %1045 = vmatpush1.msra.mxu0 0.0
    %1046 = vmatprep.subr.mxu0 0.0
    %1047 = vmatpush1.msra.mxu0 0.0
    %1048 = vmatprep.subr.mxu0 0.0
    %1049 = vmatpush1.msra.mxu0 0.0
    %1050 = vmatprep.subr.mxu0 0.0
    %1051 = vmatpush1.msra.mxu0 %v236
    %1052 = vmatprep.subr.mxu0 0.0
    %1053 = vmatpush1.msra.mxu0 %v235
    %1054 = vmatprep.subr.mxu0 0.0
    %1055 = vmatpush1.msra.mxu0 %v234
    %1056 = vmatprep.subr.mxu0 0.0
    %1057 = vmatpush1.msra.mxu0 %v233
    %1058 = vmatprep.subr.mxu0 0.0
    %1059 = vmatpush2.msra.mxu0 0.0
    %1060 = vmatprep.subr.mxu0 0.0
    %1061 = vmatpush2.msra.mxu0 0.0
    %1062 = vmatprep.subr.mxu0 0.0
    %1063 = vmatpush2.msra.mxu0 0.0
    %1064 = vmatprep.subr.mxu0 0.0
    %1065 = vmatpush2.msra.mxu0 0.0
    %1066 = vmatprep.subr.mxu0 0.0
    %1067 = vmatpush2.msra.mxu0 0.0
    %1068 = vmatprep.subr.mxu0 0.0
    %1069 = vmatpush2.msra.mxu0 0.0
    %1070 = vmatprep.subr.mxu0 0.0
    %1071 = vmatpush2.msra.mxu0 0.0
    %1072 = vmatprep.subr.mxu0 0.0
    %1073 = vmatpush2.msra.mxu0 0.0
    %1074 = vmatprep.subr.mxu0 0.0
    %1075 = vmatpush2.msra.mxu0 0.0
    %1076 = vmatprep.subr.mxu0 0.0
    %1077 = vmatpush2.msra.mxu0 0.0
    %1078 = vmatprep.subr.mxu0 0.0
    %1079 = vmatpush2.msra.mxu0 0.0
    %1080 = vmatprep.subr.mxu0 0.0
    %1081 = vmatpush2.msra.mxu0 0.0
    %1082 = vmatprep.subr.mxu0 0.0
    %1083 = vmatpush2.msra.mxu0 0.0
    %1084 = vmatprep.subr.mxu0 0.0
    %1085 = vmatpush2.msra.mxu0 0.0
    %1086 = vmatprep.subr.mxu0 0.0
    %1087 = vmatpush2.msra.mxu0 0.0
    %1088 = vmatprep.subr.mxu0 0.0
    %1089 = vmatpush2.msra.mxu0 0.0
    %1090 = vmatprep.mubr.f32.mxu0 0.0
    %1091 = vmatmul.mubr.f32.gmra.mxu0 %v1022
    %v1092 = vpop.f32.mrf.mxu0
    %v1093 = vadd.f32 0.0, %v1092
    %v1094 = vpop.f32.mrf.mxu0
    %1095 = vmatprep.mubr.f32.mxu0 0.0
    %1096 = vmatmul.mubr.f32.gmra.mxu0 %v1024
    %v1097 = vpop.f32.mrf.mxu0
    %v1098 = vadd.f32 0.0, %v1097
    %v1099 = vpop.f32.mrf.mxu0
    %1100 = vdwg.mxu0
    %v1101 = vadd.f32 %v1016, %v1093
    %v1102 = vadd.f32 %v1017, %v1098
    %v1103 = vxor.u32 %v1101, 2147483648
    %v1104 = vxor.u32 %v1102, 2147483648
    %v1105 = vmul.f32 %v1103, 1.442695
    %v1106 = vpow.pop %v1105
    %v1107 = vmul.f32 %v1104, 1.442695
    %v1108 = vpow.pop %v1107
    %v1109 = vadd.f32 %v1106, 1.0
    %v1110 = vadd.f32 %v1108, 1.0
    %v1111 = vrcp.pop %v1109
    %v1112 = vmul.f32 1.0, %v1111
    %v1113 = vrcp.pop %v1110
    %v1114 = vmul.f32 1.0, %v1113
    %v1115 = vadd.f32 %v1093, %v339
    %v1116 = vadd.f32 %v1098, %v339
    %1119 = vrot.lane.b32.xlu0 %v1115, 64
    %v1120 = vpop.permute.xlu0 %1119
    %1121 = vrot.lane.b32.xlu0 %v1116, 64
    %v1122 = vpop.permute.xlu0 %1121
    %v1125 = vmul.f32 %v1112, %v1120
    %v1126 = vmul.f32 %v1114, %v1122
    %1129 = vrot.lane.b32.xlu0 %v1125, 64
    %v1130 = vpop.permute.xlu0 %1129
    %1131 = vrot.lane.b32.xlu0 %v1126, 64
    %v1132 = vpop.permute.xlu0 %1131
    %v1135 = vadd.f32 %v1016, %v1130
    %v1136 = vadd.f32 %v1017, %v1132
    %v1137 = vtanh.pop %v1135
    %v1138 = vtanh.pop %v1136
    %v1139 = vsub.f32 1.0, %v1112
    %v1140 = vsub.f32 1.0, %v1114
    %1143 = vrot.lane.b32.xlu0 %v1137, 96
    %v1144 = vpop.permute.xlu0 %1143
    %1145 = vrot.lane.b32.xlu0 %v1138, 96
    %v1146 = vpop.permute.xlu0 %1145
    %v1149 = vmul.f32 %v1139, %v1144
    %v1150 = vmul.f32 %v1140, %v1146
    %v1151 = vmul.f32 %v1112, %v998
    %v1152 = vmul.f32 %v1114, %v999
    %v1153 = vadd.f32 %v1149, %v1151
    %v1154 = vadd.f32 %v1150, %v1152
    %s1155 = scalar_lea.vmem [#allocation3], 80
    %v1156 = vld [vmem:[%s1155] sm:$0xff]
    %v1157 = vld [vmem:[%s1155 + $0x8] sm:$0xff]
    %1160 = vrot.lane.b32.xlu0 %v1153, 64
    %v1161 = vpop.permute.xlu0 %1160
    %1162 = vrot.lane.b32.xlu0 %v1154, 64
    %v1163 = vpop.permute.xlu0 %1162
    %v1166 = vmul.f32 %v1156, %v1161
    %v1167 = vmul.f32 %v1157, %v1163
    %v1168 = vadd.f32 %v1013, %v1166
    %v1169 = vadd.f32 %v1014, %v1167
    %s1170 = scalar_lea.vmem [#allocation2], 96
    %v1171 = vld [vmem:[%s1170] sm:$0xff]
    %v1172 = vld [vmem:[%s1170 + $0x8] sm:$0xff]
    %1173 = vrot.lane.b32.xlu0 %v1153, 96
    %v1174 = vpop.permute.xlu0 %1173
    %1175 = vrot.lane.b32.xlu0 %v1154, 96
    %v1176 = vpop.permute.xlu0 %1175
    %v1177 = vsel %vm244, %v1174, 0
    %v1179 = vsel %vm244, %v1176, 0
    %1181 = vmatprep.subr.mxu0 0.0
    %1182 = vmatpush1.msra.mxu0 0.0
    %1183 = vmatprep.subr.mxu0 0.0
    %1184 = vmatpush1.msra.mxu0 0.0
    %1185 = vmatprep.subr.mxu0 0.0
    %1186 = vmatpush1.msra.mxu0 0.0
    %1187 = vmatprep.subr.mxu0 0.0
    %1188 = vmatpush1.msra.mxu0 0.0
    %1189 = vmatprep.subr.mxu0 0.0
    %1190 = vmatpush1.msra.mxu0 0.0
    %1191 = vmatprep.subr.mxu0 0.0
    %1192 = vmatpush1.msra.mxu0 0.0
    %1193 = vmatprep.subr.mxu0 0.0
    %1194 = vmatpush1.msra.mxu0 0.0
    %1195 = vmatprep.subr.mxu0 0.0
    %1196 = vmatpush1.msra.mxu0 0.0
    %1197 = vmatprep.subr.mxu0 0.0
    %1198 = vmatpush1.msra.mxu0 0.0
    %1199 = vmatprep.subr.mxu0 0.0
    %1200 = vmatpush1.msra.mxu0 0.0
    %1201 = vmatprep.subr.mxu0 0.0
    %1202 = vmatpush1.msra.mxu0 0.0
    %1203 = vmatprep.subr.mxu0 0.0
    %1204 = vmatpush1.msra.mxu0 0.0
    %1205 = vmatprep.subr.mxu0 0.0
    %1206 = vmatpush1.msra.mxu0 %v236
    %1207 = vmatprep.subr.mxu0 0.0
    %1208 = vmatpush1.msra.mxu0 %v235
    %1209 = vmatprep.subr.mxu0 0.0
    %1210 = vmatpush1.msra.mxu0 %v234
    %1211 = vmatprep.subr.mxu0 0.0
    %1212 = vmatpush1.msra.mxu0 %v233
    %1213 = vmatprep.subr.mxu0 0.0
    %1214 = vmatpush2.msra.mxu0 0.0
    %1215 = vmatprep.subr.mxu0 0.0
    %1216 = vmatpush2.msra.mxu0 0.0
    %1217 = vmatprep.subr.mxu0 0.0
    %1218 = vmatpush2.msra.mxu0 0.0
    %1219 = vmatprep.subr.mxu0 0.0
    %1220 = vmatpush2.msra.mxu0 0.0
    %1221 = vmatprep.subr.mxu0 0.0
    %1222 = vmatpush2.msra.mxu0 0.0
    %1223 = vmatprep.subr.mxu0 0.0
    %1224 = vmatpush2.msra.mxu0 0.0
    %1225 = vmatprep.subr.mxu0 0.0
    %1226 = vmatpush2.msra.mxu0 0.0
    %1227 = vmatprep.subr.mxu0 0.0
    %1228 = vmatpush2.msra.mxu0 0.0
    %1229 = vmatprep.subr.mxu0 0.0
    %1230 = vmatpush2.msra.mxu0 0.0
    %1231 = vmatprep.subr.mxu0 0.0
    %1232 = vmatpush2.msra.mxu0 0.0
    %1233 = vmatprep.subr.mxu0 0.0
    %1234 = vmatpush2.msra.mxu0 0.0
    %1235 = vmatprep.subr.mxu0 0.0
    %1236 = vmatpush2.msra.mxu0 0.0
    %1237 = vmatprep.subr.mxu0 0.0
    %1238 = vmatpush2.msra.mxu0 0.0
    %1239 = vmatprep.subr.mxu0 0.0
    %1240 = vmatpush2.msra.mxu0 0.0
    %1241 = vmatprep.subr.mxu0 0.0
    %1242 = vmatpush2.msra.mxu0 0.0
    %1243 = vmatprep.subr.mxu0 0.0
    %1244 = vmatpush2.msra.mxu0 0.0
    %1245 = vmatprep.mubr.f32.mxu0 0.0
    %1246 = vmatmul.mubr.f32.gmra.mxu0 %v1177
    %v1247 = vpop.f32.mrf.mxu0
    %v1248 = vadd.f32 0.0, %v1247
    %v1249 = vpop.f32.mrf.mxu0
    %1250 = vmatprep.mubr.f32.mxu0 0.0
    %1251 = vmatmul.mubr.f32.gmra.mxu0 %v1179
    %v1252 = vpop.f32.mrf.mxu0
    %v1253 = vadd.f32 0.0, %v1252
    %v1254 = vpop.f32.mrf.mxu0
    %1255 = vdwg.mxu0
    %v1256 = vadd.f32 %v1171, %v1248
    %v1257 = vadd.f32 %v1172, %v1253
    %v1258 = vxor.u32 %v1256, 2147483648
    %v1259 = vxor.u32 %v1257, 2147483648
    %v1260 = vmul.f32 %v1258, 1.442695
    %v1261 = vpow.pop %v1260
    %v1262 = vmul.f32 %v1259, 1.442695
    %v1263 = vpow.pop %v1262
    %v1264 = vadd.f32 %v1261, 1.0
    %v1265 = vadd.f32 %v1263, 1.0
    %v1266 = vrcp.pop %v1264
    %v1267 = vmul.f32 1.0, %v1266
    %v1268 = vrcp.pop %v1265
    %v1269 = vmul.f32 1.0, %v1268
    %v1270 = vadd.f32 %v1248, %v339
    %v1271 = vadd.f32 %v1253, %v339
    %1274 = vrot.lane.b32.xlu0 %v1270, 64
    %v1275 = vpop.permute.xlu0 %1274
    %1276 = vrot.lane.b32.xlu0 %v1271, 64
    %v1277 = vpop.permute.xlu0 %1276
    %v1280 = vmul.f32 %v1267, %v1275
    %v1281 = vmul.f32 %v1269, %v1277
    %1284 = vrot.lane.b32.xlu0 %v1280, 64
    %v1285 = vpop.permute.xlu0 %1284
    %1286 = vrot.lane.b32.xlu0 %v1281, 64
    %v1287 = vpop.permute.xlu0 %1286
    %v1290 = vadd.f32 %v1171, %v1285
    %v1291 = vadd.f32 %v1172, %v1287
    %v1292 = vtanh.pop %v1290
    %v1293 = vtanh.pop %v1291
    %v1294 = vsub.f32 1.0, %v1267
    %v1295 = vsub.f32 1.0, %v1269
    %1298 = vrot.lane.b32.xlu0 %v1292, 96
    %v1299 = vpop.permute.xlu0 %1298
    %1300 = vrot.lane.b32.xlu0 %v1293, 96
    %v1301 = vpop.permute.xlu0 %1300
    %v1304 = vmul.f32 %v1294, %v1299
    %v1305 = vmul.f32 %v1295, %v1301
    %v1306 = vmul.f32 %v1267, %v1153
    %v1307 = vmul.f32 %v1269, %v1154
    %v1308 = vadd.f32 %v1304, %v1306
    %v1309 = vadd.f32 %v1305, %v1307
    %s1310 = scalar_lea.vmem [#allocation3], 96
    %v1311 = vld [vmem:[%s1310] sm:$0xff]
    %v1312 = vld [vmem:[%s1310 + $0x8] sm:$0xff]
    %1315 = vrot.lane.b32.xlu0 %v1308, 64
    %v1316 = vpop.permute.xlu0 %1315
    %1317 = vrot.lane.b32.xlu0 %v1309, 64
    %v1318 = vpop.permute.xlu0 %1317
    %v1321 = vmul.f32 %v1311, %v1316
    %v1322 = vmul.f32 %v1312, %v1318
    %v1323 = vadd.f32 %v1168, %v1321
    %v1324 = vadd.f32 %v1169, %v1322
    %s1325 = scalar_lea.vmem [#allocation2], 112
    %v1326 = vld [vmem:[%s1325] sm:$0xff]
    %v1327 = vld [vmem:[%s1325 + $0x8] sm:$0xff]
    %1328 = vrot.lane.b32.xlu0 %v1308, 96
    %v1329 = vpop.permute.xlu0 %1328
    %1330 = vrot.lane.b32.xlu0 %v1309, 96
    %v1331 = vpop.permute.xlu0 %1330
    %v1332 = vsel %vm244, %v1329, 0
    %v1334 = vsel %vm244, %v1331, 0
    %1336 = vmatprep.subr.mxu0 0.0
    %1337 = vmatpush1.msra.mxu0 0.0
    %1338 = vmatprep.subr.mxu0 0.0
    %1339 = vmatpush1.msra.mxu0 0.0
    %1340 = vmatprep.subr.mxu0 0.0
    %1341 = vmatpush1.msra.mxu0 0.0
    %1342 = vmatprep.subr.mxu0 0.0
    %1343 = vmatpush1.msra.mxu0 0.0
    %1344 = vmatprep.subr.mxu0 0.0
    %1345 = vmatpush1.msra.mxu0 0.0
    %1346 = vmatprep.subr.mxu0 0.0
    %1347 = vmatpush1.msra.mxu0 0.0
    %1348 = vmatprep.subr.mxu0 0.0
    %1349 = vmatpush1.msra.mxu0 0.0
    %1350 = vmatprep.subr.mxu0 0.0
    %1351 = vmatpush1.msra.mxu0 0.0
    %1352 = vmatprep.subr.mxu0 0.0
    %1353 = vmatpush1.msra.mxu0 0.0
    %1354 = vmatprep.subr.mxu0 0.0
    %1355 = vmatpush1.msra.mxu0 0.0
    %1356 = vmatprep.subr.mxu0 0.0
    %1357 = vmatpush1.msra.mxu0 0.0
    %1358 = vmatprep.subr.mxu0 0.0
    %1359 = vmatpush1.msra.mxu0 0.0
    %1360 = vmatprep.subr.mxu0 0.0
    %1361 = vmatpush1.msra.mxu0 %v236
    %1362 = vmatprep.subr.mxu0 0.0
    %1363 = vmatpush1.msra.mxu0 %v235
    %1364 = vmatprep.subr.mxu0 0.0
    %1365 = vmatpush1.msra.mxu0 %v234
    %1366 = vmatprep.subr.mxu0 0.0
    %1367 = vmatpush1.msra.mxu0 %v233
    %1368 = vmatprep.subr.mxu0 0.0
    %1369 = vmatpush2.msra.mxu0 0.0
    %1370 = vmatprep.subr.mxu0 0.0
    %1371 = vmatpush2.msra.mxu0 0.0
    %1372 = vmatprep.subr.mxu0 0.0
    %1373 = vmatpush2.msra.mxu0 0.0
    %1374 = vmatprep.subr.mxu0 0.0
    %1375 = vmatpush2.msra.mxu0 0.0
    %1376 = vmatprep.subr.mxu0 0.0
    %1377 = vmatpush2.msra.mxu0 0.0
    %1378 = vmatprep.subr.mxu0 0.0
    %1379 = vmatpush2.msra.mxu0 0.0
    %1380 = vmatprep.subr.mxu0 0.0
    %1381 = vmatpush2.msra.mxu0 0.0
    %1382 = vmatprep.subr.mxu0 0.0
    %1383 = vmatpush2.msra.mxu0 0.0
    %1384 = vmatprep.subr.mxu0 0.0
    %1385 = vmatpush2.msra.mxu0 0.0
    %1386 = vmatprep.subr.mxu0 0.0
    %1387 = vmatpush2.msra.mxu0 0.0
    %1388 = vmatprep.subr.mxu0 0.0
    %1389 = vmatpush2.msra.mxu0 0.0
    %1390 = vmatprep.subr.mxu0 0.0
    %1391 = vmatpush2.msra.mxu0 0.0
    %1392 = vmatprep.subr.mxu0 0.0
    %1393 = vmatpush2.msra.mxu0 0.0
    %1394 = vmatprep.subr.mxu0 0.0
    %1395 = vmatpush2.msra.mxu0 0.0
    %1396 = vmatprep.subr.mxu0 0.0
    %1397 = vmatpush2.msra.mxu0 0.0
    %1398 = vmatprep.subr.mxu0 0.0
    %1399 = vmatpush2.msra.mxu0 0.0
    %1400 = vmatprep.mubr.f32.mxu0 0.0
    %1401 = vmatmul.mubr.f32.gmra.mxu0 %v1332
    %v1402 = vpop.f32.mrf.mxu0
    %v1403 = vadd.f32 0.0, %v1402
    %v1404 = vpop.f32.mrf.mxu0
    %1405 = vmatprep.mubr.f32.mxu0 0.0
    %1406 = vmatmul.mubr.f32.gmra.mxu0 %v1334
    %v1407 = vpop.f32.mrf.mxu0
    %v1408 = vadd.f32 0.0, %v1407
    %v1409 = vpop.f32.mrf.mxu0
    %1410 = vdwg.mxu0
    %v1411 = vadd.f32 %v1326, %v1403
    %v1412 = vadd.f32 %v1327, %v1408
    %v1413 = vxor.u32 %v1411, 2147483648
    %v1414 = vxor.u32 %v1412, 2147483648
    %v1415 = vmul.f32 %v1413, 1.442695
    %v1416 = vpow.pop %v1415
    %v1417 = vmul.f32 %v1414, 1.442695
    %v1418 = vpow.pop %v1417
    %v1419 = vadd.f32 %v1416, 1.0
    %v1420 = vadd.f32 %v1418, 1.0
    %v1421 = vrcp.pop %v1419
    %v1422 = vmul.f32 1.0, %v1421
    %v1423 = vrcp.pop %v1420
    %v1424 = vmul.f32 1.0, %v1423
    %v1425 = vadd.f32 %v1403, %v339
    %v1426 = vadd.f32 %v1408, %v339
    %1429 = vrot.lane.b32.xlu0 %v1425, 64
    %v1430 = vpop.permute.xlu0 %1429
    %1431 = vrot.lane.b32.xlu0 %v1426, 64
    %v1432 = vpop.permute.xlu0 %1431
    %v1435 = vmul.f32 %v1422, %v1430
    %v1436 = vmul.f32 %v1424, %v1432
    %1439 = vrot.lane.b32.xlu0 %v1435, 64
    %v1440 = vpop.permute.xlu0 %1439
    %1441 = vrot.lane.b32.xlu0 %v1436, 64
    %v1442 = vpop.permute.xlu0 %1441
    %v1445 = vadd.f32 %v1326, %v1440
    %v1446 = vadd.f32 %v1327, %v1442
    %v1447 = vtanh.pop %v1445
    %v1448 = vtanh.pop %v1446
    %v1449 = vsub.f32 1.0, %v1422
    %v1450 = vsub.f32 1.0, %v1424
    %1453 = vrot.lane.b32.xlu0 %v1447, 96
    %v1454 = vpop.permute.xlu0 %1453
    %1455 = vrot.lane.b32.xlu0 %v1448, 96
    %v1456 = vpop.permute.xlu0 %1455
    %v1459 = vmul.f32 %v1449, %v1454
    %v1460 = vmul.f32 %v1450, %v1456
    %v1461 = vmul.f32 %v1422, %v1308
    %v1462 = vmul.f32 %v1424, %v1309
    %v1463 = vadd.f32 %v1459, %v1461
    %v1464 = vadd.f32 %v1460, %v1462
    %s1465 = scalar_lea.vmem [#allocation3], 112
    %v1466 = vld [vmem:[%s1465] sm:$0xff]
    %v1467 = vld [vmem:[%s1465 + $0x8] sm:$0xff]
    %1470 = vrot.lane.b32.xlu0 %v1463, 64
    %v1471 = vpop.permute.xlu0 %1470
    %1472 = vrot.lane.b32.xlu0 %v1464, 64
    %v1473 = vpop.permute.xlu0 %1472
    %v1476 = vmul.f32 %v1466, %v1471
    %v1477 = vmul.f32 %v1467, %v1473
    %v1478 = vadd.f32 %v1323, %v1476
    %v1479 = vadd.f32 %v1324, %v1477
    %v1480 = vld [vmem:[#allocation6 + $0xa0] sm:$0xff]
    %v1481 = vld [vmem:[#allocation6 + $0xa8] sm:$0xff]
    %v1482 = vld [vmem:[#allocation6 + $0xb0] sm:$0xff]
    %v1483 = vld [vmem:[#allocation6 + $0xb8] sm:$0xff]
    %v1484 = vld [vmem:[#allocation6 + $0xc0] sm:$0x1]
    %v1485 = vlaneseq
    %v1486 = vshrl.u32 %v1485, 7
    %v1487 = vsub.s32 0, %v1486
    %v1488 = vrot.slane %v1484, %v1487
    %1491 = vrot.lane.b32.xlu0 %v1478, 32
    %v1492 = vpop.permute.xlu0 %1491
    %1493 = vrot.lane.b32.xlu0 %v1479, 32
    %v1494 = vpop.permute.xlu0 %1493
    %v1495 = vsel %vm244, %v1492, 0
    %v1497 = vsel %vm244, %v1494, 0
    %1499 = vmatprep.subr.mxu0 0.0
    %1500 = vmatpush1.msra.mxu0 0.0
    %1501 = vmatprep.subr.mxu0 0.0
    %1502 = vmatpush1.msra.mxu0 0.0
    %1503 = vmatprep.subr.mxu0 0.0
    %1504 = vmatpush1.msra.mxu0 0.0
    %1505 = vmatprep.subr.mxu0 0.0
    %1506 = vmatpush1.msra.mxu0 0.0
    %1507 = vmatprep.subr.mxu0 0.0
    %1508 = vmatpush1.msra.mxu0 0.0
    %1509 = vmatprep.subr.mxu0 0.0
    %1510 = vmatpush1.msra.mxu0 0.0
    %1511 = vmatprep.subr.mxu0 0.0
    %1512 = vmatpush1.msra.mxu0 0.0
    %1513 = vmatprep.subr.mxu0 0.0
    %1514 = vmatpush1.msra.mxu0 0.0
    %1515 = vmatprep.subr.mxu0 0.0
    %1516 = vmatpush1.msra.mxu0 0.0
    %1517 = vmatprep.subr.mxu0 0.0
    %1518 = vmatpush1.msra.mxu0 0.0
    %1519 = vmatprep.subr.mxu0 0.0
    %1520 = vmatpush1.msra.mxu0 0.0
    %1521 = vmatprep.subr.mxu0 0.0
    %1522 = vmatpush1.msra.mxu0 0.0
    %1523 = vmatprep.subr.mxu0 0.0
    %1524 = vmatpush1.msra.mxu0 %v1483
    %1525 = vmatprep.subr.mxu0 0.0
    %1526 = vmatpush1.msra.mxu0 %v1482
    %1527 = vmatprep.subr.mxu0 0.0
    %1528 = vmatpush1.msra.mxu0 %v1481
    %1529 = vmatprep.subr.mxu0 0.0
    %1530 = vmatpush1.msra.mxu0 %v1480
    %1531 = vmatprep.subr.mxu0 0.0
    %1532 = vmatpush2.msra.mxu0 0.0
    %1533 = vmatprep.subr.mxu0 0.0
    %1534 = vmatpush2.msra.mxu0 0.0
    %1535 = vmatprep.subr.mxu0 0.0
    %1536 = vmatpush2.msra.mxu0 0.0
    %1537 = vmatprep.subr.mxu0 0.0
    %1538 = vmatpush2.msra.mxu0 0.0
    %1539 = vmatprep.subr.mxu0 0.0
    %1540 = vmatpush2.msra.mxu0 0.0
    %1541 = vmatprep.subr.mxu0 0.0
    %1542 = vmatpush2.msra.mxu0 0.0
    %1543 = vmatprep.subr.mxu0 0.0
    %1544 = vmatpush2.msra.mxu0 0.0
    %1545 = vmatprep.subr.mxu0 0.0
    %1546 = vmatpush2.msra.mxu0 0.0
    %1547 = vmatprep.subr.mxu0 0.0
    %1548 = vmatpush2.msra.mxu0 0.0
    %1549 = vmatprep.subr.mxu0 0.0
    %1550 = vmatpush2.msra.mxu0 0.0
    %1551 = vmatprep.subr.mxu0 0.0
    %1552 = vmatpush2.msra.mxu0 0.0
    %1553 = vmatprep.subr.mxu0 0.0
    %1554 = vmatpush2.msra.mxu0 0.0
    %1555 = vmatprep.subr.mxu0 0.0
    %1556 = vmatpush2.msra.mxu0 0.0
    %1557 = vmatprep.subr.mxu0 0.0
    %1558 = vmatpush2.msra.mxu0 0.0
    %1559 = vmatprep.subr.mxu0 0.0
    %1560 = vmatpush2.msra.mxu0 0.0
    %1561 = vmatprep.subr.mxu0 0.0
    %1562 = vmatpush2.msra.mxu0 0.0
    %1563 = vmatprep.mubr.f32.mxu0 0.0
    %1564 = vmatmul.mubr.f32.gmra.mxu0 %v1495
    %v1565 = vpop.f32.mrf.mxu0
    %v1566 = vadd.f32 %v1488, %v1565
    %v1567 = vpop.f32.mrf.mxu0
    %1568 = vmatprep.mubr.f32.mxu0 0.0
    %1569 = vmatmul.mubr.f32.gmra.mxu0 %v1497
    %v1570 = vpop.f32.mrf.mxu0
    %v1571 = vadd.f32 %v1488, %v1570
    %v1572 = vpop.f32.mrf.mxu0
    %1573 = vdwg.mxu0
    %1574 = vst [vmem:[#allocation8] sm:$0xff] %v1566
    %1575 = vst [vmem:[#allocation8 + $0x8] sm:$0xff] %v1571
    // Predicated region
    $region18: #{tpu_custom_call.1} parent=1 // pred_check
      _
    $region19: #{tpu_custom_call.1} parent=1 // pred_check_branch
      %1577 = sbr.rel (0) target = $region21
    $region20: #{tpu_custom_call.1} parent=1 // pred_region
      %s1579 = ssub.s32 256, 256
      %1580 = vsyncadd [#allocation5], %s1579
      %s1581 = sshll.u32 [#allocation8], 4
      %s1582 = int_to_ptr.vmem [resolvable:$true] %s1581
      %1587 = dma.vmem_to_hbm [thread:$0]  %s1582, 256, %s2, [#allocation5], 128, 128, 8
    $region21: #{tpu_custom_call.1} parent=1 // pred_fallthru
      _
    // Predicated region
    $region22: #{tpu_custom_call.1} parent=1 // pred_check
      _
    $region23: #{tpu_custom_call.1} parent=1 // pred_check_branch
      %1589 = sbr.rel (0) target = $region25
    $region24: #{tpu_custom_call.1} parent=1 // pred_region
      %1590 = dma.done [#allocation5], 256
    $region25: #{tpu_custom_call.1} parent=1 // pred_fallthru
      _
    %1591 = vsyncpa [#allocation4], 1
    %1592 = vsyncpa [#allocation7], 1
    %1593 = vsyncpa [#allocation5], 1

</llo_original>
